<compile_context>
chip_gen: v6e
topology: v6e:2x2x1
jax: 0.10.0
libtpu: 0.0.40
codegen_flags: <defaults>
</compile_context>

<pallas_src>
import functools

import jax
import jax.numpy as jnp
import numpy as np
from jax.experimental import pallas as pl
from jax.experimental.pallas import tpu as pltpu


def _distmult_kernel(h_ref, r_ref, t_ref, score_ref, l2_ref, *,
                     total_rows, ragged):
    bt, E = h_ref.shape
    dq = E // 4

    # Load each quarter directly from the VMEM block ref (lane-aligned static
    # slices, no full-width copy), upcasting bf16 -> f32 if needed.
    def quarters(ref):
        return tuple(ref[:, q * dq:(q + 1) * dq].astype(jnp.float32)
                     for q in range(4))

    s_h, x_h, y_h, z_h = quarters(h_ref)
    s_r, x_r, y_r, z_r = quarters(r_ref)
    s_t, x_t, y_t, z_t = quarters(t_ref)

    # NOTE: reference normalizes r's pieces by the norm of *h*'s pieces.
    sumsq_h = s_h * s_h + x_h * x_h + y_h * y_h + z_h * z_h
    inv = jax.lax.rsqrt(sumsq_h)          # EUP slot; replaces VPU sqrt + divide

    s_rn = s_r * inv
    x_rn = x_r * inv
    y_rn = y_r * inv
    z_rn = z_r * inv

    A = s_h * s_rn - x_h * x_rn - y_h * y_rn - z_h * z_rn
    B = s_h * x_rn + s_rn * x_h + y_h * z_rn - y_rn * z_h
    C = s_h * y_rn + s_rn * y_h + z_h * x_rn - z_rn * x_h
    D = s_h * z_rn + s_rn * z_h + x_h * y_rn - x_rn * y_h

    combined = A * s_t + B * x_t + C * y_t + D * z_t          # (bt, dq)

    # Row-sum on the idle MXU: ones(1, dq) contracted against combined's last
    # dim gives the score directly as a lane-dense (1, bt) row.
    ones_row = jnp.ones((1, dq), jnp.float32)
    score_ref[...] = jax.lax.dot_general(
        ones_row, combined,
        dimension_numbers=(((1,), (1,)), ((), ())),
        preferred_element_type=jnp.float32)                    # (1, bt)

    # Per-block l2 partial sum of squares, built entirely from the quarter
    # slices (h's sum-of-squares is reused from the normalization; r is the
    # pre-normalization tensor, as in the reference).
    sq = (sumsq_h
          + (s_r * s_r + x_r * x_r + y_r * y_r + z_r * z_r)
          + (s_t * s_t + x_t * x_t + y_t * y_t + z_t * z_t))   # (bt, dq)

    if ragged:
        # Ragged last block: rows >= total_rows are undefined out-of-bounds
        # reads; zero their contribution (jnp.where also stops any NaN from
        # rsqrt(garbage) leaking into the reduction).
        row = (jax.lax.broadcasted_iota(jnp.int32, (bt, 1), 0)
               + pl.program_id(0) * bt)
        sq = jnp.where(row < total_rows, sq, 0.0)

    # Splat-write the scalar partial into the (1,1,1) block (scalar stores to
    # VMEM are not reliably lowered; this is one vreg op per grid step).
    l2_ref[...] = jnp.zeros_like(l2_ref) + jnp.sum(sq)


def _round_up(x, m):
    return ((x + m - 1) // m) * m


def distmult_forward(h_emb, r_emb, t_emb, *, batch_tile=512,
                     vmem_limit_bytes=48 * 1024 * 1024):
    assert h_emb.shape == r_emb.shape == t_emb.shape
    B, E = h_emb.shape
    assert E % 4 == 0 and (E // 4) % 128 == 0, "quarter dim must be lane-aligned"

    # Lane-aligned batch tile (multiple of 128), shrunk for small batches.
    # 512 rows * 512 f32 * 3 inputs * 2 pipeline buffers = 6 MiB of streamed
    # input per step plus a few MiB of quarter-sized temporaries; the raised
    # vmem_limit keeps it inside scoped VMEM on v5e/v6e and under v7x's
    # 64 MiB physical VMEM.  With bf16 inputs batch_tile=1024 is reasonable.
    bt = max(128, min(_round_up(batch_tile, 128), _round_up(B, 128)))
    num_blocks = pl.cdiv(B, bt)
    ragged = (num_blocks * bt != B)   # static: enables in-kernel row masking

    kernel = functools.partial(_distmult_kernel, total_rows=B, ragged=ragged)

    score_row, l2_parts = pl.pallas_call(
        kernel,
        out_shape=(jax.ShapeDtypeStruct((1, num_blocks * bt), jnp.float32),
                   jax.ShapeDtypeStruct((num_blocks, 1, 1), jnp.float32)),
        grid_spec=pltpu.PrefetchScalarGridSpec(
            num_scalar_prefetch=0,
            grid=(num_blocks,),
            in_specs=[
                pl.BlockSpec((bt, E), lambda i: (i, 0)),
                pl.BlockSpec((bt, E), lambda i: (i, 0)),
                pl.BlockSpec((bt, E), lambda i: (i, 0)),
            ],
            out_specs=[
                pl.BlockSpec((1, bt), lambda i: (0, i)),        # lane-dense score
                pl.BlockSpec((1, 1, 1), lambda i: (i, 0, 0)),   # per-block l2 partial
            ],
        ),
        # No cross-step state -> megacore sharding OK.
        # TODO(synk): verify in an xprof profile that this actually shards
        # across both TensorCores on v7x; if not, switch to CORE_PARALLEL or
        # an explicit leading grid axis of size 2.
        compiler_params=pltpu.CompilerParams(
            dimension_semantics=("parallel",),
            vmem_limit_bytes=vmem_limit_bytes),
    )(h_emb, r_emb, t_emb)

    score = score_row[0, :B]
    # mean(h^2)+mean(t^2)+mean(r^2) == (sum of all squares) / (B * E);
    # padded rows were masked out of the partials in-kernel.
    l2_reg = jnp.sum(l2_parts) / (B * E)
    return score, l2_reg


def _reference(h, r, t):
    dq = h.shape[-1] // 4
    split = lambda x: (x[:, 0:dq], x[:, dq:2*dq], x[:, 2*dq:3*dq], x[:, 3*dq:])
    s_h, x_h, y_h, z_h = split(h)
    s_r, x_r, y_r, z_r = split(r)
    s_t, x_t, y_t, z_t = split(t)
    denom = jnp.sqrt(s_h**2 + x_h**2 + y_h**2 + z_h**2)
    s_r, x_r, y_r, z_r = s_r/denom, x_r/denom, y_r/denom, z_r/denom
    A = s_h*s_r - x_h*x_r - y_h*y_r - z_h*z_r
    B = s_h*x_r + s_r*x_h + y_h*z_r - y_r*z_h
    C = s_h*y_r + s_r*y_h + z_h*x_r - z_r*x_h
    D = s_h*z_r + s_r*z_h + x_h*y_r - x_r*y_h
    score = jnp.sum(A*s_t + B*x_t + C*y_t + D*z_t, axis=-1)
    l2 = jnp.mean(h**2) + jnp.mean(t**2) + jnp.mean(r**2)
    return score, l2


def _check(batch, emb_dim, emb_range, key):
    kh, kr, kt = jax.random.split(key, 3)
    h_emb = jax.random.uniform(kh, (batch, emb_dim), jnp.float32,
                               minval=-emb_range, maxval=emb_range)
    r_emb = jax.random.uniform(kr, (batch, emb_dim), jnp.float32,
                               minval=-emb_range, maxval=emb_range)
    t_emb = jax.random.uniform(kt, (batch, emb_dim), jnp.float32,
                               minval=-emb_range, maxval=emb_range)

    score, l2_reg = distmult_forward(h_emb, r_emb, t_emb)
    jax.block_until_ready((score, l2_reg))

    ref_score, ref_l2 = _reference(h_emb, r_emb, t_emb)
    np.testing.assert_allclose(np.asarray(score), np.asarray(ref_score),
                               rtol=1e-5, atol=1e-5)
    np.testing.assert_allclose(float(l2_reg), float(ref_l2),
                               rtol=1e-5, atol=1e-7)


if __name__ == "__main__":
    # DistMult.__init__ defines embedding_range = (gamma + epsilon) / emb_dim;
    # use it to deterministically initialize synthetic embeddings.
    gamma, epsilon = 9.0, 2.0
    emb_dim = 512                         # emb_dim // 4 = 128 (lane-aligned)
    emb_range = (gamma + epsilon) / emb_dim

    key = jax.random.PRNGKey(0)
    k1, k2 = jax.random.split(key)
    # batch=200 exercises the ragged (masked) last block — no jnp.pad copies;
    # batch=256 exercises the exact-tile (unmasked) path.
    _check(200, emb_dim, emb_range, k1)
    _check(256, emb_dim, emb_range, k2)

    print("KERNEL_OK")
</pallas_src>

<mosaic_0001>
module attributes {stable_mosaic.version = 11 : i64} {
  func.func @_distmult_kernel(%arg0: i32, %arg1: memref<256x512xf32, #tpu.memory_space<vmem>>, %arg2: memref<256x512xf32, #tpu.memory_space<vmem>>, %arg3: memref<256x512xf32, #tpu.memory_space<vmem>>, %arg4: memref<1x256xf32, #tpu.memory_space<vmem>>, %arg5: memref<1x1x1xf32, #tpu.memory_space<vmem>>) attributes {dimension_semantics = [#tpu.dimension_semantics<parallel>], iteration_bounds = array<i64: 1>, scalar_prefetch = 0 : i64, scratch_operands = 0 : i64, tpu.core_type = #tpu.core_type<tc>, window_params = [{transform_indices = @transform_0, window_bounds = array<i64: 256, 512>}, {transform_indices = @transform_1, window_bounds = array<i64: 256, 512>}, {transform_indices = @transform_2, window_bounds = array<i64: 256, 512>}, {transform_indices = @transform_3, window_bounds = array<i64: 1, 256>}, {transform_indices = @transform_4, window_bounds = array<i64: 1, 1, 1>}]} {
    %c0 = arith.constant 0 : index
    %c0_0 = arith.constant 0 : index
    %0 = vector.load %arg1[%c0, %c0_0] : memref<256x512xf32, #tpu.memory_space<vmem>>, vector<256x128xf32>
    %c0_1 = arith.constant 0 : index
    %c128 = arith.constant 128 : index
    %1 = vector.load %arg1[%c0_1, %c128] : memref<256x512xf32, #tpu.memory_space<vmem>>, vector<256x128xf32>
    %c0_2 = arith.constant 0 : index
    %c256 = arith.constant 256 : index
    %2 = vector.load %arg1[%c0_2, %c256] : memref<256x512xf32, #tpu.memory_space<vmem>>, vector<256x128xf32>
    %c0_3 = arith.constant 0 : index
    %c384 = arith.constant 384 : index
    %3 = vector.load %arg1[%c0_3, %c384] : memref<256x512xf32, #tpu.memory_space<vmem>>, vector<256x128xf32>
    %c0_4 = arith.constant 0 : index
    %c0_5 = arith.constant 0 : index
    %4 = vector.load %arg2[%c0_4, %c0_5] : memref<256x512xf32, #tpu.memory_space<vmem>>, vector<256x128xf32>
    %c0_6 = arith.constant 0 : index
    %c128_7 = arith.constant 128 : index
    %5 = vector.load %arg2[%c0_6, %c128_7] : memref<256x512xf32, #tpu.memory_space<vmem>>, vector<256x128xf32>
    %c0_8 = arith.constant 0 : index
    %c256_9 = arith.constant 256 : index
    %6 = vector.load %arg2[%c0_8, %c256_9] : memref<256x512xf32, #tpu.memory_space<vmem>>, vector<256x128xf32>
    %c0_10 = arith.constant 0 : index
    %c384_11 = arith.constant 384 : index
    %7 = vector.load %arg2[%c0_10, %c384_11] : memref<256x512xf32, #tpu.memory_space<vmem>>, vector<256x128xf32>
    %c0_12 = arith.constant 0 : index
    %c0_13 = arith.constant 0 : index
    %8 = vector.load %arg3[%c0_12, %c0_13] : memref<256x512xf32, #tpu.memory_space<vmem>>, vector<256x128xf32>
    %c0_14 = arith.constant 0 : index
    %c128_15 = arith.constant 128 : index
    %9 = vector.load %arg3[%c0_14, %c128_15] : memref<256x512xf32, #tpu.memory_space<vmem>>, vector<256x128xf32>
    %c0_16 = arith.constant 0 : index
    %c256_17 = arith.constant 256 : index
    %10 = vector.load %arg3[%c0_16, %c256_17] : memref<256x512xf32, #tpu.memory_space<vmem>>, vector<256x128xf32>
    %c0_18 = arith.constant 0 : index
    %c384_19 = arith.constant 384 : index
    %11 = vector.load %arg3[%c0_18, %c384_19] : memref<256x512xf32, #tpu.memory_space<vmem>>, vector<256x128xf32>
    %12 = arith.mulf %0, %0 : vector<256x128xf32>
    %13 = arith.mulf %1, %1 : vector<256x128xf32>
    %14 = arith.addf %12, %13 : vector<256x128xf32>
    %15 = arith.mulf %2, %2 : vector<256x128xf32>
    %16 = arith.addf %14, %15 : vector<256x128xf32>
    %17 = arith.mulf %3, %3 : vector<256x128xf32>
    %18 = arith.addf %16, %17 : vector<256x128xf32>
    %19 = math.rsqrt %18 : vector<256x128xf32>
    %20 = arith.mulf %4, %19 : vector<256x128xf32>
    %21 = arith.mulf %5, %19 : vector<256x128xf32>
    %22 = arith.mulf %6, %19 : vector<256x128xf32>
    %23 = arith.mulf %7, %19 : vector<256x128xf32>
    %24 = arith.mulf %0, %20 : vector<256x128xf32>
    %25 = arith.mulf %1, %21 : vector<256x128xf32>
    %26 = arith.subf %24, %25 : vector<256x128xf32>
    %27 = arith.mulf %2, %22 : vector<256x128xf32>
    %28 = arith.subf %26, %27 : vector<256x128xf32>
    %29 = arith.mulf %3, %23 : vector<256x128xf32>
    %30 = arith.subf %28, %29 : vector<256x128xf32>
    %31 = arith.mulf %0, %21 : vector<256x128xf32>
    %32 = arith.mulf %20, %1 : vector<256x128xf32>
    %33 = arith.addf %31, %32 : vector<256x128xf32>
    %34 = arith.mulf %2, %23 : vector<256x128xf32>
    %35 = arith.addf %33, %34 : vector<256x128xf32>
    %36 = arith.mulf %22, %3 : vector<256x128xf32>
    %37 = arith.subf %35, %36 : vector<256x128xf32>
    %38 = arith.mulf %0, %22 : vector<256x128xf32>
    %39 = arith.mulf %20, %2 : vector<256x128xf32>
    %40 = arith.addf %38, %39 : vector<256x128xf32>
    %41 = arith.mulf %3, %21 : vector<256x128xf32>
    %42 = arith.addf %40, %41 : vector<256x128xf32>
    %43 = arith.mulf %23, %1 : vector<256x128xf32>
    %44 = arith.subf %42, %43 : vector<256x128xf32>
    %45 = arith.mulf %0, %23 : vector<256x128xf32>
    %46 = arith.mulf %20, %3 : vector<256x128xf32>
    %47 = arith.addf %45, %46 : vector<256x128xf32>
    %48 = arith.mulf %1, %22 : vector<256x128xf32>
    %49 = arith.addf %47, %48 : vector<256x128xf32>
    %50 = arith.mulf %21, %2 : vector<256x128xf32>
    %51 = arith.subf %49, %50 : vector<256x128xf32>
    %52 = arith.mulf %30, %8 : vector<256x128xf32>
    %53 = arith.mulf %37, %9 : vector<256x128xf32>
    %54 = arith.addf %52, %53 : vector<256x128xf32>
    %55 = arith.mulf %44, %10 : vector<256x128xf32>
    %56 = arith.addf %54, %55 : vector<256x128xf32>
    %57 = arith.mulf %51, %11 : vector<256x128xf32>
    %58 = arith.addf %56, %57 : vector<256x128xf32>
    %cst = arith.constant 1.000000e+00 : f32
    %59 = vector.broadcast %cst : f32 to vector<1x128xf32>
    %cst_20 = arith.constant dense<0.000000e+00> : vector<1x256xf32>
    %60 = tpu.matmul %59, %58, %cst_20 {dimension_numbers = #tpu.dot_dimension_numbers<[1], [1], [0], [0], [0, 0, 1, 0], [], []>} : vector<1x128xf32>, vector<256x128xf32>, vector<1x256xf32> -> vector<1x256xf32>
    %c0_21 = arith.constant 0 : index
    %c0_22 = arith.constant 0 : index
    %61 = vector.load %arg4[%c0_21, %c0_22] : memref<1x256xf32, #tpu.memory_space<vmem>>, vector<1x256xf32>
    tpu.vector_store %arg4[%c0_21, %c0_22], %60 {strides = array<i32>} : memref<1x256xf32, #tpu.memory_space<vmem>>, vector<1x256xf32>,
    %62 = arith.mulf %4, %4 : vector<256x128xf32>
    %63 = arith.mulf %5, %5 : vector<256x128xf32>
    %64 = arith.addf %62, %63 : vector<256x128xf32>
    %65 = arith.mulf %6, %6 : vector<256x128xf32>
    %66 = arith.addf %64, %65 : vector<256x128xf32>
    %67 = arith.mulf %7, %7 : vector<256x128xf32>
    %68 = arith.addf %66, %67 : vector<256x128xf32>
    %69 = arith.addf %18, %68 : vector<256x128xf32>
    %70 = arith.mulf %8, %8 : vector<256x128xf32>
    %71 = arith.mulf %9, %9 : vector<256x128xf32>
    %72 = arith.addf %70, %71 : vector<256x128xf32>
    %73 = arith.mulf %10, %10 : vector<256x128xf32>
    %74 = arith.addf %72, %73 : vector<256x128xf32>
    %75 = arith.mulf %11, %11 : vector<256x128xf32>
    %76 = arith.addf %74, %75 : vector<256x128xf32>
    %77 = arith.addf %69, %76 : vector<256x128xf32>
    %78 = tpu.iota {dimensions = array<i32: 0>} : vector<256x1xi32>
    %c256_i32 = arith.constant 256 : i32
    %79 = arith.muli %arg0, %c256_i32 : i32
    %80 = vector.broadcast %79 : i32 to vector<256x1xi32>
    %81 = arith.addi %78, %80 : vector<256x1xi32>
    %c200_i32 = arith.constant 200 : i32
    %82 = vector.broadcast %c200_i32 : i32 to vector<256x1xi32>
    %83 = arith.cmpi slt, %81, %82 : vector<256x1xi32>
    %cst_23 = arith.constant 0.000000e+00 : f32
    %84 = vector.shape_cast %83 : vector<256x1xi1> to vector<256x1xi1>
    %85 = vector.broadcast %84 : vector<256x1xi1> to vector<256x128xi1>
    %86 = vector.broadcast %cst_23 : f32 to vector<256x128xf32>
    %87 = arith.select %85, %77, %86 : vector<256x128xi1>, vector<256x128xf32>
    %cst_24 = arith.constant 0.000000e+00 : f32
    %88 = vector.broadcast %cst_24 : f32 to vector<1x1x1xf32>
    %89 = vector.shape_cast %87 : vector<256x128xf32> to vector<1x256x128xf32>
    %cst_25 = arith.constant dense<0.000000e+00> : vector<1xf32>
    %90 = vector.multi_reduction <add>, %89, %cst_25 [1, 2] : vector<1x256x128xf32> to vector<1xf32>
    %91 = vector.shape_cast %90 : vector<1xf32> to vector<1x1x1xf32>
    %92 = vector.extract %91[0, 0, 0] : f32 from vector<1x1x1xf32>
    %93 = vector.broadcast %92 : f32 to vector<1x1x1xf32>
    %94 = arith.addf %88, %93 : vector<1x1x1xf32>
    %c0_26 = arith.constant 0 : index
    %c0_27 = arith.constant 0 : index
    %c0_28 = arith.constant 0 : index
    %95 = vector.load %arg5[%c0_26, %c0_27, %c0_28] : memref<1x1x1xf32, #tpu.memory_space<vmem>>, vector<1x1x1xf32>
    tpu.vector_store %arg5[%c0_26, %c0_27, %c0_28], %94 {strides = array<i32>} : memref<1x1x1xf32, #tpu.memory_space<vmem>>, vector<1x1x1xf32>,
    return
  }
  func.func @transform_0(%arg0: i32) -> (i32, i32) {
    %c0_i32 = arith.constant 0 : i32
    %c0_i32_0 = arith.constant 0 : i32
    return %arg0, %c0_i32 : i32, i32
  }
  func.func @transform_1(%arg0: i32) -> (i32, i32) {
    %c0_i32 = arith.constant 0 : i32
    %c0_i32_0 = arith.constant 0 : i32
    return %arg0, %c0_i32 : i32, i32
  }
  func.func @transform_2(%arg0: i32) -> (i32, i32) {
    %c0_i32 = arith.constant 0 : i32
    %c0_i32_0 = arith.constant 0 : i32
    return %arg0, %c0_i32 : i32, i32
  }
  func.func @transform_3(%arg0: i32) -> (i32, i32) {
    %c0_i32 = arith.constant 0 : i32
    %c0_i32_0 = arith.constant 0 : i32
    return %c0_i32, %arg0 : i32, i32
  }
  func.func @transform_4(%arg0: i32) -> (i32, i32, i32) {
    %c0_i32 = arith.constant 0 : i32
    %c0_i32_0 = arith.constant 0 : i32
    %c0_i32_1 = arith.constant 0 : i32
    return %arg0, %c0_i32, %c0_i32_0 : i32, i32, i32
  }
}

</mosaic_0001>

<llo_original>
// kernel: tpu_custom_call.1
$region0: #{tpu_custom_call.1}
  #allocation0 [shape = 'u32[]', space=smem, size = 0x4, offset = 0x4, fixed_abs, tag = 'smem constant byte address 0x4 - core index']
  #allocation1 [shape = 'u32[144,128]{1,0:T(1,128)}', space=vmem, size = 0x12000, scoped, tag = 'internal scratch']
  %s0 = inlined_call_operand.hbm [shape: f32[200,512], index: 0, kind: input, shape index: {}]
  %s1 = inlined_call_operand.hbm [shape: f32[200,512], index: 1, kind: input, shape index: {}]
  %s2 = inlined_call_operand.hbm [shape: f32[200,512], index: 2, kind: input, shape index: {}]
  %s3 = inlined_call_operand.hbm [shape: f32[1,256], index: 3, kind: output, shape index: {0}]
  %s4 = inlined_call_operand.hbm [shape: f32[1,1,1], index: 4, kind: output, shape index: {1}]
  %5 = xla_tuple %s3, %s4
  %s6 = sld [smem:[#allocation0]]
  $region42: #{tpu_custom_call.1} parent=0
    _
  %s8 = ssub.s32 1, %s6
  %s9 = scalar_select 0, %s8, %s6
  $region1: #{tpu_custom_call.1} parent=0
    #allocation2 [shape = 'u8[524288]{0}', space=vmem, size = 0x80000, scoped, tag = 'input window, operand 0, single buffered']
    #allocation3 [shape = 's32[1]{0}', space=sflag, size = 0x4, scoped, tag = 'scoped memory for tpu_custom_call.1']
    #allocation4 [shape = 's32[1]{0}', space=sflag, size = 0x4, scoped, tag = 'scoped memory for tpu_custom_call.1']
    #allocation5 [shape = 'u8[524288]{0}', space=vmem, size = 0x80000, scoped, tag = 'input window, operand 1, single buffered']
    #allocation6 [shape = 's32[1]{0}', space=sflag, size = 0x4, scoped, tag = 'scoped memory for tpu_custom_call.1']
    #allocation7 [shape = 'u8[524288]{0}', space=vmem, size = 0x80000, scoped, tag = 'input window, operand 2, single buffered']
    #allocation8 [shape = 'u8[1024]{0}', space=vmem, size = 0x400, scoped, tag = 'output window, operand 0, single buffered']
    #allocation9 [shape = 'u8[512]{0}', space=vmem, size = 0x400, scoped, tag = 'output window, operand 1, single buffered']
    #allocation10 [shape = 's32[1]{0}', space=sflag, size = 0x4, scoped, tag = 'scoped memory for tpu_custom_call.1']
    %10 = vsyncpa [#allocation3], 0
    %11 = vsyncpa [#allocation6], 0
    %12 = vsyncpa [#allocation4], 0
    %13 = vsyncpa [#allocation10], 0
    // Predicated region
    $region2: #{tpu_custom_call.1} parent=1 // pred_check
      _
    $region3: #{tpu_custom_call.1} parent=1 // pred_check_branch
      %15 = sbr.rel (0) target = $region5
    $region4: #{tpu_custom_call.1} parent=1 // pred_region
      %s17 = ssub.s32 16384, 12800
      %18 = vsyncadd [#allocation3], %s17
      %s19 = sshll.u32 [#allocation2], 4
      %s20 = int_to_ptr.vmem [resolvable:$true] %s19
      %25 = dma.hbm_to_vmem [thread:$0]  %s0, 12800, %s20, [#allocation3], 512, 512, 32
    $region5: #{tpu_custom_call.1} parent=1 // pred_fallthru
      _
    // Predicated region
    $region6: #{tpu_custom_call.1} parent=1 // pred_check
      _
    $region7: #{tpu_custom_call.1} parent=1 // pred_check_branch
      %27 = sbr.rel (0) target = $region9
    $region8: #{tpu_custom_call.1} parent=1 // pred_region
      %s29 = ssub.s32 16384, 12800
      %30 = vsyncadd [#allocation6], %s29
      %s31 = sshll.u32 [#allocation5], 4
      %s32 = int_to_ptr.vmem [resolvable:$true] %s31
      %37 = dma.hbm_to_vmem [thread:$0]  %s1, 12800, %s32, [#allocation6], 512, 512, 32
    $region9: #{tpu_custom_call.1} parent=1 // pred_fallthru
      _
    // Predicated region
    $region10: #{tpu_custom_call.1} parent=1 // pred_check
      _
    $region11: #{tpu_custom_call.1} parent=1 // pred_check_branch
      %39 = sbr.rel (0) target = $region13
    $region12: #{tpu_custom_call.1} parent=1 // pred_region
      %s41 = ssub.s32 16384, 12800
      %42 = vsyncadd [#allocation6], %s41
      %s43 = sshll.u32 [#allocation7], 4
      %s44 = int_to_ptr.vmem [resolvable:$true] %s43
      %49 = dma.hbm_to_vmem [thread:$0]  %s2, 12800, %s44, [#allocation6], 512, 512, 32
    $region13: #{tpu_custom_call.1} parent=1 // pred_fallthru
      _
    // Predicated region
    $region14: #{tpu_custom_call.1} parent=1 // pred_check
      _
    $region15: #{tpu_custom_call.1} parent=1 // pred_check_branch
      %51 = sbr.rel (0) target = $region17
    $region16: #{tpu_custom_call.1} parent=1 // pred_region
      %52 = dma.done [#allocation3], 16384
    $region17: #{tpu_custom_call.1} parent=1 // pred_fallthru
      _
    // Predicated region
    $region18: #{tpu_custom_call.1} parent=1 // pred_check
      _
    $region19: #{tpu_custom_call.1} parent=1 // pred_check_branch
      %54 = sbr.rel (0) target = $region21
    $region20: #{tpu_custom_call.1} parent=1 // pred_region
      %55 = dma.done [#allocation6], 16384
    $region21: #{tpu_custom_call.1} parent=1 // pred_fallthru
      _
    // Predicated region
    $region22: #{tpu_custom_call.1} parent=1 // pred_check
      _
    $region23: #{tpu_custom_call.1} parent=1 // pred_check_branch
      %57 = sbr.rel (0) target = $region25
    $region24: #{tpu_custom_call.1} parent=1 // pred_region
      %58 = dma.done [#allocation6], 16384
    $region25: #{tpu_custom_call.1} parent=1 // pred_fallthru
      _
    %v59 = vld [vmem:[#allocation2] sm:$0xff]
    %v60 = vld [vmem:[#allocation2 + $0x20] sm:$0xff]
    %v61 = vld [vmem:[#allocation2 + $0x40] sm:$0xff]
    %v62 = vld [vmem:[#allocation2 + $0x60] sm:$0xff]
    %v63 = vld [vmem:[#allocation2 + $0x80] sm:$0xff]
    %v64 = vld [vmem:[#allocation2 + $0xa0] sm:$0xff]
    %v65 = vld [vmem:[#allocation2 + $0xc0] sm:$0xff]
    %v66 = vld [vmem:[#allocation2 + $0xe0] sm:$0xff]
    %v67 = vld [vmem:[#allocation2 + $0x100] sm:$0xff]
    %v68 = vld [vmem:[#allocation2 + $0x120] sm:$0xff]
    %v69 = vld [vmem:[#allocation2 + $0x140] sm:$0xff]
    %v70 = vld [vmem:[#allocation2 + $0x160] sm:$0xff]
    %v71 = vld [vmem:[#allocation2 + $0x180] sm:$0xff]
    %v72 = vld [vmem:[#allocation2 + $0x1a0] sm:$0xff]
    %v73 = vld [vmem:[#allocation2 + $0x1c0] sm:$0xff]
    %v74 = vld [vmem:[#allocation2 + $0x1e0] sm:$0xff]
    %v75 = vld [vmem:[#allocation2 + $0x200] sm:$0xff]
    %v76 = vld [vmem:[#allocation2 + $0x220] sm:$0xff]
    %v77 = vld [vmem:[#allocation2 + $0x240] sm:$0xff]
    %v78 = vld [vmem:[#allocation2 + $0x260] sm:$0xff]
    %v79 = vld [vmem:[#allocation2 + $0x280] sm:$0xff]
    %v80 = vld [vmem:[#allocation2 + $0x2a0] sm:$0xff]
    %v81 = vld [vmem:[#allocation2 + $0x2c0] sm:$0xff]
    %v82 = vld [vmem:[#allocation2 + $0x2e0] sm:$0xff]
    %v83 = vld [vmem:[#allocation2 + $0x300] sm:$0xff]
    %v84 = vld [vmem:[#allocation2 + $0x320] sm:$0xff]
    %v85 = vld [vmem:[#allocation2 + $0x340] sm:$0xff]
    %v86 = vld [vmem:[#allocation2 + $0x360] sm:$0xff]
    %v87 = vld [vmem:[#allocation2 + $0x380] sm:$0xff]
    %v88 = vld [vmem:[#allocation2 + $0x3a0] sm:$0xff]
    %v89 = vld [vmem:[#allocation2 + $0x3c0] sm:$0xff]
    %v90 = vld [vmem:[#allocation2 + $0x3e0] sm:$0xff]
    %v91 = vld [vmem:[#allocation2 + $0x8] sm:$0xff]
    %v92 = vld [vmem:[#allocation2 + $0x28] sm:$0xff]
    %v93 = vld [vmem:[#allocation2 + $0x48] sm:$0xff]
    %v94 = vld [vmem:[#allocation2 + $0x68] sm:$0xff]
    %v95 = vld [vmem:[#allocation2 + $0x88] sm:$0xff]
    %v96 = vld [vmem:[#allocation2 + $0xa8] sm:$0xff]
    %v97 = vld [vmem:[#allocation2 + $0xc8] sm:$0xff]
    %v98 = vld [vmem:[#allocation2 + $0xe8] sm:$0xff]
    %v99 = vld [vmem:[#allocation2 + $0x108] sm:$0xff]
    %v100 = vld [vmem:[#allocation2 + $0x128] sm:$0xff]
    %v101 = vld [vmem:[#allocation2 + $0x148] sm:$0xff]
    %v102 = vld [vmem:[#allocation2 + $0x168] sm:$0xff]
    %v103 = vld [vmem:[#allocation2 + $0x188] sm:$0xff]
    %v104 = vld [vmem:[#allocation2 + $0x1a8] sm:$0xff]
    %v105 = vld [vmem:[#allocation2 + $0x1c8] sm:$0xff]
    %v106 = vld [vmem:[#allocation2 + $0x1e8] sm:$0xff]
    %v107 = vld [vmem:[#allocation2 + $0x208] sm:$0xff]
    %v108 = vld [vmem:[#allocation2 + $0x228] sm:$0xff]
    %v109 = vld [vmem:[#allocation2 + $0x248] sm:$0xff]
    %v110 = vld [vmem:[#allocation2 + $0x268] sm:$0xff]
    %v111 = vld [vmem:[#allocation2 + $0x288] sm:$0xff]
    %v112 = vld [vmem:[#allocation2 + $0x2a8] sm:$0xff]
    %v113 = vld [vmem:[#allocation2 + $0x2c8] sm:$0xff]
    %v114 = vld [vmem:[#allocation2 + $0x2e8] sm:$0xff]
    %v115 = vld [vmem:[#allocation2 + $0x308] sm:$0xff]
    %v116 = vld [vmem:[#allocation2 + $0x328] sm:$0xff]
    %v117 = vld [vmem:[#allocation2 + $0x348] sm:$0xff]
    %v118 = vld [vmem:[#allocation2 + $0x368] sm:$0xff]
    %v119 = vld [vmem:[#allocation2 + $0x388] sm:$0xff]
    %v120 = vld [vmem:[#allocation2 + $0x3a8] sm:$0xff]
    %v121 = vld [vmem:[#allocation2 + $0x3c8] sm:$0xff]
    %v122 = vld [vmem:[#allocation2 + $0x3e8] sm:$0xff]
    %v123 = vld [vmem:[#allocation2 + $0x10] sm:$0xff]
    %v124 = vld [vmem:[#allocation2 + $0x30] sm:$0xff]
    %v125 = vld [vmem:[#allocation2 + $0x50] sm:$0xff]
    %v126 = vld [vmem:[#allocation2 + $0x70] sm:$0xff]
    %v127 = vld [vmem:[#allocation2 + $0x90] sm:$0xff]
    %v128 = vld [vmem:[#allocation2 + $0xb0] sm:$0xff]
    %v129 = vld [vmem:[#allocation2 + $0xd0] sm:$0xff]
    %v130 = vld [vmem:[#allocation2 + $0xf0] sm:$0xff]
    %v131 = vld [vmem:[#allocation2 + $0x110] sm:$0xff]
    %v132 = vld [vmem:[#allocation2 + $0x130] sm:$0xff]
    %v133 = vld [vmem:[#allocation2 + $0x150] sm:$0xff]
    %v134 = vld [vmem:[#allocation2 + $0x170] sm:$0xff]
    %v135 = vld [vmem:[#allocation2 + $0x190] sm:$0xff]
    %v136 = vld [vmem:[#allocation2 + $0x1b0] sm:$0xff]
    %v137 = vld [vmem:[#allocation2 + $0x1d0] sm:$0xff]
    %v138 = vld [vmem:[#allocation2 + $0x1f0] sm:$0xff]
    %v139 = vld [vmem:[#allocation2 + $0x210] sm:$0xff]
    %v140 = vld [vmem:[#allocation2 + $0x230] sm:$0xff]
    %v141 = vld [vmem:[#allocation2 + $0x250] sm:$0xff]
    %v142 = vld [vmem:[#allocation2 + $0x270] sm:$0xff]
    %v143 = vld [vmem:[#allocation2 + $0x290] sm:$0xff]
    %v144 = vld [vmem:[#allocation2 + $0x2b0] sm:$0xff]
    %v145 = vld [vmem:[#allocation2 + $0x2d0] sm:$0xff]
    %v146 = vld [vmem:[#allocation2 + $0x2f0] sm:$0xff]
    %v147 = vld [vmem:[#allocation2 + $0x310] sm:$0xff]
    %v148 = vld [vmem:[#allocation2 + $0x330] sm:$0xff]
    %v149 = vld [vmem:[#allocation2 + $0x350] sm:$0xff]
    %v150 = vld [vmem:[#allocation2 + $0x370] sm:$0xff]
    %v151 = vld [vmem:[#allocation2 + $0x390] sm:$0xff]
    %v152 = vld [vmem:[#allocation2 + $0x3b0] sm:$0xff]
    %v153 = vld [vmem:[#allocation2 + $0x3d0] sm:$0xff]
    %v154 = vld [vmem:[#allocation2 + $0x3f0] sm:$0xff]
    %v155 = vld [vmem:[#allocation2 + $0x18] sm:$0xff]
    %v156 = vld [vmem:[#allocation2 + $0x38] sm:$0xff]
    %v157 = vld [vmem:[#allocation2 + $0x58] sm:$0xff]
    %v158 = vld [vmem:[#allocation2 + $0x78] sm:$0xff]
    %v159 = vld [vmem:[#allocation2 + $0x98] sm:$0xff]
    %v160 = vld [vmem:[#allocation2 + $0xb8] sm:$0xff]
    %v161 = vld [vmem:[#allocation2 + $0xd8] sm:$0xff]
    %v162 = vld [vmem:[#allocation2 + $0xf8] sm:$0xff]
    %v163 = vld [vmem:[#allocation2 + $0x118] sm:$0xff]
    %v164 = vld [vmem:[#allocation2 + $0x138] sm:$0xff]
    %v165 = vld [vmem:[#allocation2 + $0x158] sm:$0xff]
    %v166 = vld [vmem:[#allocation2 + $0x178] sm:$0xff]
    %v167 = vld [vmem:[#allocation2 + $0x198] sm:$0xff]
    %v168 = vld [vmem:[#allocation2 + $0x1b8] sm:$0xff]
    %v169 = vld [vmem:[#allocation2 + $0x1d8] sm:$0xff]
    %v170 = vld [vmem:[#allocation2 + $0x1f8] sm:$0xff]
    %v171 = vld [vmem:[#allocation2 + $0x218] sm:$0xff]
    %v172 = vld [vmem:[#allocation2 + $0x238] sm:$0xff]
    %v173 = vld [vmem:[#allocation2 + $0x258] sm:$0xff]
    %v174 = vld [vmem:[#allocation2 + $0x278] sm:$0xff]
    %v175 = vld [vmem:[#allocation2 + $0x298] sm:$0xff]
    %v176 = vld [vmem:[#allocation2 + $0x2b8] sm:$0xff]
    %v177 = vld [vmem:[#allocation2 + $0x2d8] sm:$0xff]
    %v178 = vld [vmem:[#allocation2 + $0x2f8] sm:$0xff]
    %v179 = vld [vmem:[#allocation2 + $0x318] sm:$0xff]
    %v180 = vld [vmem:[#allocation2 + $0x338] sm:$0xff]
    %v181 = vld [vmem:[#allocation2 + $0x358] sm:$0xff]
    %v182 = vld [vmem:[#allocation2 + $0x378] sm:$0xff]
    %v183 = vld [vmem:[#allocation2 + $0x398] sm:$0xff]
    %v184 = vld [vmem:[#allocation2 + $0x3b8] sm:$0xff]
    %v185 = vld [vmem:[#allocation2 + $0x3d8] sm:$0xff]
    %v186 = vld [vmem:[#allocation2 + $0x3f8] sm:$0xff]
    %v187 = vld [vmem:[#allocation5] sm:$0xff]
    %v188 = vld [vmem:[#allocation5 + $0x20] sm:$0xff]
    %v189 = vld [vmem:[#allocation5 + $0x40] sm:$0xff]
    %v190 = vld [vmem:[#allocation5 + $0x60] sm:$0xff]
    %v191 = vld [vmem:[#allocation5 + $0x80] sm:$0xff]
    %v192 = vld [vmem:[#allocation5 + $0xa0] sm:$0xff]
    %v193 = vld [vmem:[#allocation5 + $0xc0] sm:$0xff]
    %v194 = vld [vmem:[#allocation5 + $0xe0] sm:$0xff]
    %v195 = vld [vmem:[#allocation5 + $0x100] sm:$0xff]
    %v196 = vld [vmem:[#allocation5 + $0x120] sm:$0xff]
    %v197 = vld [vmem:[#allocation5 + $0x140] sm:$0xff]
    %v198 = vld [vmem:[#allocation5 + $0x160] sm:$0xff]
    %v199 = vld [vmem:[#allocation5 + $0x180] sm:$0xff]
    %v200 = vld [vmem:[#allocation5 + $0x1a0] sm:$0xff]
    %v201 = vld [vmem:[#allocation5 + $0x1c0] sm:$0xff]
    %v202 = vld [vmem:[#allocation5 + $0x1e0] sm:$0xff]
    %v203 = vld [vmem:[#allocation5 + $0x200] sm:$0xff]
    %v204 = vld [vmem:[#allocation5 + $0x220] sm:$0xff]
    %v205 = vld [vmem:[#allocation5 + $0x240] sm:$0xff]
    %v206 = vld [vmem:[#allocation5 + $0x260] sm:$0xff]
    %v207 = vld [vmem:[#allocation5 + $0x280] sm:$0xff]
    %v208 = vld [vmem:[#allocation5 + $0x2a0] sm:$0xff]
    %v209 = vld [vmem:[#allocation5 + $0x2c0] sm:$0xff]
    %v210 = vld [vmem:[#allocation5 + $0x2e0] sm:$0xff]
    %v211 = vld [vmem:[#allocation5 + $0x300] sm:$0xff]
    %v212 = vld [vmem:[#allocation5 + $0x320] sm:$0xff]
    %v213 = vld [vmem:[#allocation5 + $0x340] sm:$0xff]
    %v214 = vld [vmem:[#allocation5 + $0x360] sm:$0xff]
    %v215 = vld [vmem:[#allocation5 + $0x380] sm:$0xff]
    %v216 = vld [vmem:[#allocation5 + $0x3a0] sm:$0xff]
    %v217 = vld [vmem:[#allocation5 + $0x3c0] sm:$0xff]
    %v218 = vld [vmem:[#allocation5 + $0x3e0] sm:$0xff]
    %v219 = vld [vmem:[#allocation5 + $0x8] sm:$0xff]
    %v220 = vld [vmem:[#allocation5 + $0x28] sm:$0xff]
    %v221 = vld [vmem:[#allocation5 + $0x48] sm:$0xff]
    %v222 = vld [vmem:[#allocation5 + $0x68] sm:$0xff]
    %v223 = vld [vmem:[#allocation5 + $0x88] sm:$0xff]
    %v224 = vld [vmem:[#allocation5 + $0xa8] sm:$0xff]
    %v225 = vld [vmem:[#allocation5 + $0xc8] sm:$0xff]
    %v226 = vld [vmem:[#allocation5 + $0xe8] sm:$0xff]
    %v227 = vld [vmem:[#allocation5 + $0x108] sm:$0xff]
    %v228 = vld [vmem:[#allocation5 + $0x128] sm:$0xff]
    %v229 = vld [vmem:[#allocation5 + $0x148] sm:$0xff]
    %v230 = vld [vmem:[#allocation5 + $0x168] sm:$0xff]
    %v231 = vld [vmem:[#allocation5 + $0x188] sm:$0xff]
    %v232 = vld [vmem:[#allocation5 + $0x1a8] sm:$0xff]
    %v233 = vld [vmem:[#allocation5 + $0x1c8] sm:$0xff]
    %v234 = vld [vmem:[#allocation5 + $0x1e8] sm:$0xff]
    %v235 = vld [vmem:[#allocation5 + $0x208] sm:$0xff]
    %v236 = vld [vmem:[#allocation5 + $0x228] sm:$0xff]
    %v237 = vld [vmem:[#allocation5 + $0x248] sm:$0xff]
    %v238 = vld [vmem:[#allocation5 + $0x268] sm:$0xff]
    %v239 = vld [vmem:[#allocation5 + $0x288] sm:$0xff]
    %v240 = vld [vmem:[#allocation5 + $0x2a8] sm:$0xff]
    %v241 = vld [vmem:[#allocation5 + $0x2c8] sm:$0xff]
    %v242 = vld [vmem:[#allocation5 + $0x2e8] sm:$0xff]
    %v243 = vld [vmem:[#allocation5 + $0x308] sm:$0xff]
    %v244 = vld [vmem:[#allocation5 + $0x328] sm:$0xff]
    %v245 = vld [vmem:[#allocation5 + $0x348] sm:$0xff]
    %v246 = vld [vmem:[#allocation5 + $0x368] sm:$0xff]
    %v247 = vld [vmem:[#allocation5 + $0x388] sm:$0xff]
    %v248 = vld [vmem:[#allocation5 + $0x3a8] sm:$0xff]
    %v249 = vld [vmem:[#allocation5 + $0x3c8] sm:$0xff]
    %v250 = vld [vmem:[#allocation5 + $0x3e8] sm:$0xff]
    %v251 = vld [vmem:[#allocation5 + $0x10] sm:$0xff]
    %v252 = vld [vmem:[#allocation5 + $0x30] sm:$0xff]
    %v253 = vld [vmem:[#allocation5 + $0x50] sm:$0xff]
    %v254 = vld [vmem:[#allocation5 + $0x70] sm:$0xff]
    %v255 = vld [vmem:[#allocation5 + $0x90] sm:$0xff]
    %v256 = vld [vmem:[#allocation5 + $0xb0] sm:$0xff]
    %v257 = vld [vmem:[#allocation5 + $0xd0] sm:$0xff]
    %v258 = vld [vmem:[#allocation5 + $0xf0] sm:$0xff]
    %v259 = vld [vmem:[#allocation5 + $0x110] sm:$0xff]
    %v260 = vld [vmem:[#allocation5 + $0x130] sm:$0xff]
    %v261 = vld [vmem:[#allocation5 + $0x150] sm:$0xff]
    %v262 = vld [vmem:[#allocation5 + $0x170] sm:$0xff]
    %v263 = vld [vmem:[#allocation5 + $0x190] sm:$0xff]
    %v264 = vld [vmem:[#allocation5 + $0x1b0] sm:$0xff]
    %v265 = vld [vmem:[#allocation5 + $0x1d0] sm:$0xff]
    %v266 = vld [vmem:[#allocation5 + $0x1f0] sm:$0xff]
    %v267 = vld [vmem:[#allocation5 + $0x210] sm:$0xff]
    %v268 = vld [vmem:[#allocation5 + $0x230] sm:$0xff]
    %v269 = vld [vmem:[#allocation5 + $0x250] sm:$0xff]
    %v270 = vld [vmem:[#allocation5 + $0x270] sm:$0xff]
    %v271 = vld [vmem:[#allocation5 + $0x290] sm:$0xff]
    %v272 = vld [vmem:[#allocation5 + $0x2b0] sm:$0xff]
    %v273 = vld [vmem:[#allocation5 + $0x2d0] sm:$0xff]
    %v274 = vld [vmem:[#allocation5 + $0x2f0] sm:$0xff]
    %v275 = vld [vmem:[#allocation5 + $0x310] sm:$0xff]
    %v276 = vld [vmem:[#allocation5 + $0x330] sm:$0xff]
    %v277 = vld [vmem:[#allocation5 + $0x350] sm:$0xff]
    %v278 = vld [vmem:[#allocation5 + $0x370] sm:$0xff]
    %v279 = vld [vmem:[#allocation5 + $0x390] sm:$0xff]
    %v280 = vld [vmem:[#allocation5 + $0x3b0] sm:$0xff]
    %v281 = vld [vmem:[#allocation5 + $0x3d0] sm:$0xff]
    %v282 = vld [vmem:[#allocation5 + $0x3f0] sm:$0xff]
    %v283 = vld [vmem:[#allocation5 + $0x18] sm:$0xff]
    %v284 = vld [vmem:[#allocation5 + $0x38] sm:$0xff]
    %v285 = vld [vmem:[#allocation5 + $0x58] sm:$0xff]
    %v286 = vld [vmem:[#allocation5 + $0x78] sm:$0xff]
    %v287 = vld [vmem:[#allocation5 + $0x98] sm:$0xff]
    %v288 = vld [vmem:[#allocation5 + $0xb8] sm:$0xff]
    %v289 = vld [vmem:[#allocation5 + $0xd8] sm:$0xff]
    %v290 = vld [vmem:[#allocation5 + $0xf8] sm:$0xff]
    %v291 = vld [vmem:[#allocation5 + $0x118] sm:$0xff]
    %v292 = vld [vmem:[#allocation5 + $0x138] sm:$0xff]
    %v293 = vld [vmem:[#allocation5 + $0x158] sm:$0xff]
    %v294 = vld [vmem:[#allocation5 + $0x178] sm:$0xff]
    %v295 = vld [vmem:[#allocation5 + $0x198] sm:$0xff]
    %v296 = vld [vmem:[#allocation5 + $0x1b8] sm:$0xff]
    %v297 = vld [vmem:[#allocation5 + $0x1d8] sm:$0xff]
    %v298 = vld [vmem:[#allocation5 + $0x1f8] sm:$0xff]
    %v299 = vld [vmem:[#allocation5 + $0x218] sm:$0xff]
    %v300 = vld [vmem:[#allocation5 + $0x238] sm:$0xff]
    %v301 = vld [vmem:[#allocation5 + $0x258] sm:$0xff]
    %v302 = vld [vmem:[#allocation5 + $0x278] sm:$0xff]
    %v303 = vld [vmem:[#allocation5 + $0x298] sm:$0xff]
    %v304 = vld [vmem:[#allocation5 + $0x2b8] sm:$0xff]
    %v305 = vld [vmem:[#allocation5 + $0x2d8] sm:$0xff]
    %v306 = vld [vmem:[#allocation5 + $0x2f8] sm:$0xff]
    %v307 = vld [vmem:[#allocation5 + $0x318] sm:$0xff]
    %v308 = vld [vmem:[#allocation5 + $0x338] sm:$0xff]
    %v309 = vld [vmem:[#allocation5 + $0x358] sm:$0xff]
    %v310 = vld [vmem:[#allocation5 + $0x378] sm:$0xff]
    %v311 = vld [vmem:[#allocation5 + $0x398] sm:$0xff]
    %v312 = vld [vmem:[#allocation5 + $0x3b8] sm:$0xff]
    %v313 = vld [vmem:[#allocation5 + $0x3d8] sm:$0xff]
    %v314 = vld [vmem:[#allocation5 + $0x3f8] sm:$0xff]
    %v315 = vld [vmem:[#allocation7] sm:$0xff]
    %v316 = vld [vmem:[#allocation7 + $0x20] sm:$0xff]
    %v317 = vld [vmem:[#allocation7 + $0x40] sm:$0xff]
    %v318 = vld [vmem:[#allocation7 + $0x60] sm:$0xff]
    %v319 = vld [vmem:[#allocation7 + $0x80] sm:$0xff]
    %v320 = vld [vmem:[#allocation7 + $0xa0] sm:$0xff]
    %v321 = vld [vmem:[#allocation7 + $0xc0] sm:$0xff]
    %v322 = vld [vmem:[#allocation7 + $0xe0] sm:$0xff]
    %v323 = vld [vmem:[#allocation7 + $0x100] sm:$0xff]
    %v324 = vld [vmem:[#allocation7 + $0x120] sm:$0xff]
    %v325 = vld [vmem:[#allocation7 + $0x140] sm:$0xff]
    %v326 = vld [vmem:[#allocation7 + $0x160] sm:$0xff]
    %v327 = vld [vmem:[#allocation7 + $0x180] sm:$0xff]
    %v328 = vld [vmem:[#allocation7 + $0x1a0] sm:$0xff]
    %v329 = vld [vmem:[#allocation7 + $0x1c0] sm:$0xff]
    %v330 = vld [vmem:[#allocation7 + $0x1e0] sm:$0xff]
    %v331 = vld [vmem:[#allocation7 + $0x200] sm:$0xff]
    %v332 = vld [vmem:[#allocation7 + $0x220] sm:$0xff]
    %v333 = vld [vmem:[#allocation7 + $0x240] sm:$0xff]
    %v334 = vld [vmem:[#allocation7 + $0x260] sm:$0xff]
    %v335 = vld [vmem:[#allocation7 + $0x280] sm:$0xff]
    %v336 = vld [vmem:[#allocation7 + $0x2a0] sm:$0xff]
    %v337 = vld [vmem:[#allocation7 + $0x2c0] sm:$0xff]
    %v338 = vld [vmem:[#allocation7 + $0x2e0] sm:$0xff]
    %v339 = vld [vmem:[#allocation7 + $0x300] sm:$0xff]
    %v340 = vld [vmem:[#allocation7 + $0x320] sm:$0xff]
    %v341 = vld [vmem:[#allocation7 + $0x340] sm:$0xff]
    %v342 = vld [vmem:[#allocation7 + $0x360] sm:$0xff]
    %v343 = vld [vmem:[#allocation7 + $0x380] sm:$0xff]
    %v344 = vld [vmem:[#allocation7 + $0x3a0] sm:$0xff]
    %v345 = vld [vmem:[#allocation7 + $0x3c0] sm:$0xff]
    %v346 = vld [vmem:[#allocation7 + $0x3e0] sm:$0xff]
    %v347 = vld [vmem:[#allocation7 + $0x8] sm:$0xff]
    %v348 = vld [vmem:[#allocation7 + $0x28] sm:$0xff]
    %v349 = vld [vmem:[#allocation7 + $0x48] sm:$0xff]
    %v350 = vld [vmem:[#allocation7 + $0x68] sm:$0xff]
    %v351 = vld [vmem:[#allocation7 + $0x88] sm:$0xff]
    %v352 = vld [vmem:[#allocation7 + $0xa8] sm:$0xff]
    %v353 = vld [vmem:[#allocation7 + $0xc8] sm:$0xff]
    %v354 = vld [vmem:[#allocation7 + $0xe8] sm:$0xff]
    %v355 = vld [vmem:[#allocation7 + $0x108] sm:$0xff]
    %v356 = vld [vmem:[#allocation7 + $0x128] sm:$0xff]
    %v357 = vld [vmem:[#allocation7 + $0x148] sm:$0xff]
    %v358 = vld [vmem:[#allocation7 + $0x168] sm:$0xff]
    %v359 = vld [vmem:[#allocation7 + $0x188] sm:$0xff]
    %v360 = vld [vmem:[#allocation7 + $0x1a8] sm:$0xff]
    %v361 = vld [vmem:[#allocation7 + $0x1c8] sm:$0xff]
    %v362 = vld [vmem:[#allocation7 + $0x1e8] sm:$0xff]
    %v363 = vld [vmem:[#allocation7 + $0x208] sm:$0xff]
    %v364 = vld [vmem:[#allocation7 + $0x228] sm:$0xff]
    %v365 = vld [vmem:[#allocation7 + $0x248] sm:$0xff]
    %v366 = vld [vmem:[#allocation7 + $0x268] sm:$0xff]
    %v367 = vld [vmem:[#allocation7 + $0x288] sm:$0xff]
    %v368 = vld [vmem:[#allocation7 + $0x2a8] sm:$0xff]
    %v369 = vld [vmem:[#allocation7 + $0x2c8] sm:$0xff]
    %v370 = vld [vmem:[#allocation7 + $0x2e8] sm:$0xff]
    %v371 = vld [vmem:[#allocation7 + $0x308] sm:$0xff]
    %v372 = vld [vmem:[#allocation7 + $0x328] sm:$0xff]
    %v373 = vld [vmem:[#allocation7 + $0x348] sm:$0xff]
    %v374 = vld [vmem:[#allocation7 + $0x368] sm:$0xff]
    %v375 = vld [vmem:[#allocation7 + $0x388] sm:$0xff]
    %v376 = vld [vmem:[#allocation7 + $0x3a8] sm:$0xff]
    %v377 = vld [vmem:[#allocation7 + $0x3c8] sm:$0xff]
    %v378 = vld [vmem:[#allocation7 + $0x3e8] sm:$0xff]
    %v379 = vld [vmem:[#allocation7 + $0x10] sm:$0xff]
    %v380 = vld [vmem:[#allocation7 + $0x30] sm:$0xff]
    %v381 = vld [vmem:[#allocation7 + $0x50] sm:$0xff]
    %v382 = vld [vmem:[#allocation7 + $0x70] sm:$0xff]
    %v383 = vld [vmem:[#allocation7 + $0x90] sm:$0xff]
    %v384 = vld [vmem:[#allocation7 + $0xb0] sm:$0xff]
    %v385 = vld [vmem:[#allocation7 + $0xd0] sm:$0xff]
    %v386 = vld [vmem:[#allocation7 + $0xf0] sm:$0xff]
    %v387 = vld [vmem:[#allocation7 + $0x110] sm:$0xff]
    %v388 = vld [vmem:[#allocation7 + $0x130] sm:$0xff]
    %v389 = vld [vmem:[#allocation7 + $0x150] sm:$0xff]
    %v390 = vld [vmem:[#allocation7 + $0x170] sm:$0xff]
    %v391 = vld [vmem:[#allocation7 + $0x190] sm:$0xff]
    %v392 = vld [vmem:[#allocation7 + $0x1b0] sm:$0xff]
    %v393 = vld [vmem:[#allocation7 + $0x1d0] sm:$0xff]
    %v394 = vld [vmem:[#allocation7 + $0x1f0] sm:$0xff]
    %v395 = vld [vmem:[#allocation7 + $0x210] sm:$0xff]
    %v396 = vld [vmem:[#allocation7 + $0x230] sm:$0xff]
    %v397 = vld [vmem:[#allocation7 + $0x250] sm:$0xff]
    %v398 = vld [vmem:[#allocation7 + $0x270] sm:$0xff]
    %v399 = vld [vmem:[#allocation7 + $0x290] sm:$0xff]
    %v400 = vld [vmem:[#allocation7 + $0x2b0] sm:$0xff]
    %v401 = vld [vmem:[#allocation7 + $0x2d0] sm:$0xff]
    %v402 = vld [vmem:[#allocation7 + $0x2f0] sm:$0xff]
    %v403 = vld [vmem:[#allocation7 + $0x310] sm:$0xff]
    %v404 = vld [vmem:[#allocation7 + $0x330] sm:$0xff]
    %v405 = vld [vmem:[#allocation7 + $0x350] sm:$0xff]
    %v406 = vld [vmem:[#allocation7 + $0x370] sm:$0xff]
    %v407 = vld [vmem:[#allocation7 + $0x390] sm:$0xff]
    %v408 = vld [vmem:[#allocation7 + $0x3b0] sm:$0xff]
    %v409 = vld [vmem:[#allocation7 + $0x3d0] sm:$0xff]
    %v410 = vld [vmem:[#allocation7 + $0x3f0] sm:$0xff]
    %v411 = vld [vmem:[#allocation7 + $0x18] sm:$0xff]
    %v412 = vld [vmem:[#allocation7 + $0x38] sm:$0xff]
    %v413 = vld [vmem:[#allocation7 + $0x58] sm:$0xff]
    %v414 = vld [vmem:[#allocation7 + $0x78] sm:$0xff]
    %v415 = vld [vmem:[#allocation7 + $0x98] sm:$0xff]
    %v416 = vld [vmem:[#allocation7 + $0xb8] sm:$0xff]
    %v417 = vld [vmem:[#allocation7 + $0xd8] sm:$0xff]
    %v418 = vld [vmem:[#allocation7 + $0xf8] sm:$0xff]
    %v419 = vld [vmem:[#allocation7 + $0x118] sm:$0xff]
    %v420 = vld [vmem:[#allocation7 + $0x138] sm:$0xff]
    %v421 = vld [vmem:[#allocation7 + $0x158] sm:$0xff]
    %v422 = vld [vmem:[#allocation7 + $0x178] sm:$0xff]
    %v423 = vld [vmem:[#allocation7 + $0x198] sm:$0xff]
    %v424 = vld [vmem:[#allocation7 + $0x1b8] sm:$0xff]
    %v425 = vld [vmem:[#allocation7 + $0x1d8] sm:$0xff]
    %v426 = vld [vmem:[#allocation7 + $0x1f8] sm:$0xff]
    %v427 = vld [vmem:[#allocation7 + $0x218] sm:$0xff]
    %v428 = vld [vmem:[#allocation7 + $0x238] sm:$0xff]
    %v429 = vld [vmem:[#allocation7 + $0x258] sm:$0xff]
    %v430 = vld [vmem:[#allocation7 + $0x278] sm:$0xff]
    %v431 = vld [vmem:[#allocation7 + $0x298] sm:$0xff]
    %v432 = vld [vmem:[#allocation7 + $0x2b8] sm:$0xff]
    %v433 = vld [vmem:[#allocation7 + $0x2d8] sm:$0xff]
    %v434 = vld [vmem:[#allocation7 + $0x2f8] sm:$0xff]
    %v435 = vld [vmem:[#allocation7 + $0x318] sm:$0xff]
    %v436 = vld [vmem:[#allocation7 + $0x338] sm:$0xff]
    %v437 = vld [vmem:[#allocation7 + $0x358] sm:$0xff]
    %v438 = vld [vmem:[#allocation7 + $0x378] sm:$0xff]
    %v439 = vld [vmem:[#allocation7 + $0x398] sm:$0xff]
    %v440 = vld [vmem:[#allocation7 + $0x3b8] sm:$0xff]
    %v441 = vld [vmem:[#allocation7 + $0x3d8] sm:$0xff]
    %v442 = vld [vmem:[#allocation7 + $0x3f8] sm:$0xff]
    %v443 = vmul.f32 %v59, %v59
    %v444 = vmul.f32 %v60, %v60
    %v445 = vmul.f32 %v61, %v61
    %v446 = vmul.f32 %v62, %v62
    %v447 = vmul.f32 %v63, %v63
    %v448 = vmul.f32 %v64, %v64
    %v449 = vmul.f32 %v65, %v65
    %v450 = vmul.f32 %v66, %v66
    %v451 = vmul.f32 %v67, %v67
    %v452 = vmul.f32 %v68, %v68
    %v453 = vmul.f32 %v69, %v69
    %v454 = vmul.f32 %v70, %v70
    %v455 = vmul.f32 %v71, %v71
    %v456 = vmul.f32 %v72, %v72
    %v457 = vmul.f32 %v73, %v73
    %v458 = vmul.f32 %v74, %v74
    %v459 = vmul.f32 %v75, %v75
    %v460 = vmul.f32 %v76, %v76
    %v461 = vmul.f32 %v77, %v77
    %v462 = vmul.f32 %v78, %v78
    %v463 = vmul.f32 %v79, %v79
    %v464 = vmul.f32 %v80, %v80
    %v465 = vmul.f32 %v81, %v81
    %v466 = vmul.f32 %v82, %v82
    %v467 = vmul.f32 %v83, %v83
    %v468 = vmul.f32 %v84, %v84
    %v469 = vmul.f32 %v85, %v85
    %v470 = vmul.f32 %v86, %v86
    %v471 = vmul.f32 %v87, %v87
    %v472 = vmul.f32 %v88, %v88
    %v473 = vmul.f32 %v89, %v89
    %v474 = vmul.f32 %v90, %v90
    %v475 = vmul.f32 %v91, %v91
    %v476 = vmul.f32 %v92, %v92
    %v477 = vmul.f32 %v93, %v93
    %v478 = vmul.f32 %v94, %v94
    %v479 = vmul.f32 %v95, %v95
    %v480 = vmul.f32 %v96, %v96
    %v481 = vmul.f32 %v97, %v97
    %v482 = vmul.f32 %v98, %v98
    %v483 = vmul.f32 %v99, %v99
    %v484 = vmul.f32 %v100, %v100
    %v485 = vmul.f32 %v101, %v101
    %v486 = vmul.f32 %v102, %v102
    %v487 = vmul.f32 %v103, %v103
    %v488 = vmul.f32 %v104, %v104
    %v489 = vmul.f32 %v105, %v105
    %v490 = vmul.f32 %v106, %v106
    %v491 = vmul.f32 %v107, %v107
    %v492 = vmul.f32 %v108, %v108
    %v493 = vmul.f32 %v109, %v109
    %v494 = vmul.f32 %v110, %v110
    %v495 = vmul.f32 %v111, %v111
    %v496 = vmul.f32 %v112, %v112
    %v497 = vmul.f32 %v113, %v113
    %v498 = vmul.f32 %v114, %v114
    %v499 = vmul.f32 %v115, %v115
    %v500 = vmul.f32 %v116, %v116
    %v501 = vmul.f32 %v117, %v117
    %v502 = vmul.f32 %v118, %v118
    %v503 = vmul.f32 %v119, %v119
    %v504 = vmul.f32 %v120, %v120
    %v505 = vmul.f32 %v121, %v121
    %v506 = vmul.f32 %v122, %v122
    %v507 = vadd.f32 %v443, %v475
    %v508 = vadd.f32 %v444, %v476
    %v509 = vadd.f32 %v445, %v477
    %v510 = vadd.f32 %v446, %v478
    %v511 = vadd.f32 %v447, %v479
    %v512 = vadd.f32 %v448, %v480
    %v513 = vadd.f32 %v449, %v481
    %v514 = vadd.f32 %v450, %v482
    %v515 = vadd.f32 %v451, %v483
    %v516 = vadd.f32 %v452, %v484
    %v517 = vadd.f32 %v453, %v485
    %v518 = vadd.f32 %v454, %v486
    %v519 = vadd.f32 %v455, %v487
    %v520 = vadd.f32 %v456, %v488
    %v521 = vadd.f32 %v457, %v489
    %v522 = vadd.f32 %v458, %v490
    %v523 = vadd.f32 %v459, %v491
    %v524 = vadd.f32 %v460, %v492
    %v525 = vadd.f32 %v461, %v493
    %v526 = vadd.f32 %v462, %v494
    %v527 = vadd.f32 %v463, %v495
    %v528 = vadd.f32 %v464, %v496
    %v529 = vadd.f32 %v465, %v497
    %v530 = vadd.f32 %v466, %v498
    %v531 = vadd.f32 %v467, %v499
    %v532 = vadd.f32 %v468, %v500
    %v533 = vadd.f32 %v469, %v501
    %v534 = vadd.f32 %v470, %v502
    %v535 = vadd.f32 %v471, %v503
    %v536 = vadd.f32 %v472, %v504
    %v537 = vadd.f32 %v473, %v505
    %v538 = vadd.f32 %v474, %v506
    %v539 = vmul.f32 %v123, %v123
    %v540 = vmul.f32 %v124, %v124
    %v541 = vmul.f32 %v125, %v125
    %v542 = vmul.f32 %v126, %v126
    %v543 = vmul.f32 %v127, %v127
    %v544 = vmul.f32 %v128, %v128
    %v545 = vmul.f32 %v129, %v129
    %v546 = vmul.f32 %v130, %v130
    %v547 = vmul.f32 %v131, %v131
    %v548 = vmul.f32 %v132, %v132
    %v549 = vmul.f32 %v133, %v133
    %v550 = vmul.f32 %v134, %v134
    %v551 = vmul.f32 %v135, %v135
    %v552 = vmul.f32 %v136, %v136
    %v553 = vmul.f32 %v137, %v137
    %v554 = vmul.f32 %v138, %v138
    %v555 = vmul.f32 %v139, %v139
    %v556 = vmul.f32 %v140, %v140
    %v557 = vmul.f32 %v141, %v141
    %v558 = vmul.f32 %v142, %v142
    %v559 = vmul.f32 %v143, %v143
    %v560 = vmul.f32 %v144, %v144
    %v561 = vmul.f32 %v145, %v145
    %v562 = vmul.f32 %v146, %v146
    %v563 = vmul.f32 %v147, %v147
    %v564 = vmul.f32 %v148, %v148
    %v565 = vmul.f32 %v149, %v149
    %v566 = vmul.f32 %v150, %v150
    %v567 = vmul.f32 %v151, %v151
    %v568 = vmul.f32 %v152, %v152
    %v569 = vmul.f32 %v153, %v153
    %v570 = vmul.f32 %v154, %v154
    %v571 = vadd.f32 %v507, %v539
    %v572 = vadd.f32 %v508, %v540
    %v573 = vadd.f32 %v509, %v541
    %v574 = vadd.f32 %v510, %v542
    %v575 = vadd.f32 %v511, %v543
    %v576 = vadd.f32 %v512, %v544
    %v577 = vadd.f32 %v513, %v545
    %v578 = vadd.f32 %v514, %v546
    %v579 = vadd.f32 %v515, %v547
    %v580 = vadd.f32 %v516, %v548
    %v581 = vadd.f32 %v517, %v549
    %v582 = vadd.f32 %v518, %v550
    %v583 = vadd.f32 %v519, %v551
    %v584 = vadd.f32 %v520, %v552
    %v585 = vadd.f32 %v521, %v553
    %v586 = vadd.f32 %v522, %v554
    %v587 = vadd.f32 %v523, %v555
    %v588 = vadd.f32 %v524, %v556
    %v589 = vadd.f32 %v525, %v557
    %v590 = vadd.f32 %v526, %v558
    %v591 = vadd.f32 %v527, %v559
    %v592 = vadd.f32 %v528, %v560
    %v593 = vadd.f32 %v529, %v561
    %v594 = vadd.f32 %v530, %v562
    %v595 = vadd.f32 %v531, %v563
    %v596 = vadd.f32 %v532, %v564
    %v597 = vadd.f32 %v533, %v565
    %v598 = vadd.f32 %v534, %v566
    %v599 = vadd.f32 %v535, %v567
    %v600 = vadd.f32 %v536, %v568
    %v601 = vadd.f32 %v537, %v569
    %v602 = vadd.f32 %v538, %v570
    %v603 = vmul.f32 %v155, %v155
    %v604 = vmul.f32 %v156, %v156
    %v605 = vmul.f32 %v157, %v157
    %v606 = vmul.f32 %v158, %v158
    %v607 = vmul.f32 %v159, %v159
    %v608 = vmul.f32 %v160, %v160
    %v609 = vmul.f32 %v161, %v161
    %v610 = vmul.f32 %v162, %v162
    %v611 = vmul.f32 %v163, %v163
    %v612 = vmul.f32 %v164, %v164
    %v613 = vmul.f32 %v165, %v165
    %v614 = vmul.f32 %v166, %v166
    %v615 = vmul.f32 %v167, %v167
    %v616 = vmul.f32 %v168, %v168
    %v617 = vmul.f32 %v169, %v169
    %v618 = vmul.f32 %v170, %v170
    %v619 = vmul.f32 %v171, %v171
    %v620 = vmul.f32 %v172, %v172
    %v621 = vmul.f32 %v173, %v173
    %v622 = vmul.f32 %v174, %v174
    %v623 = vmul.f32 %v175, %v175
    %v624 = vmul.f32 %v176, %v176
    %v625 = vmul.f32 %v177, %v177
    %v626 = vmul.f32 %v178, %v178
    %v627 = vmul.f32 %v179, %v179
    %v628 = vmul.f32 %v180, %v180
    %v629 = vmul.f32 %v181, %v181
    %v630 = vmul.f32 %v182, %v182
    %v631 = vmul.f32 %v183, %v183
    %v632 = vmul.f32 %v184, %v184
    %v633 = vmul.f32 %v185, %v185
    %v634 = vmul.f32 %v186, %v186
    %v635 = vadd.f32 %v571, %v603
    %v636 = vadd.f32 %v572, %v604
    %v637 = vadd.f32 %v573, %v605
    %v638 = vadd.f32 %v574, %v606
    %v639 = vadd.f32 %v575, %v607
    %v640 = vadd.f32 %v576, %v608
    %v641 = vadd.f32 %v577, %v609
    %v642 = vadd.f32 %v578, %v610
    %v643 = vadd.f32 %v579, %v611
    %v644 = vadd.f32 %v580, %v612
    %v645 = vadd.f32 %v581, %v613
    %v646 = vadd.f32 %v582, %v614
    %v647 = vadd.f32 %v583, %v615
    %v648 = vadd.f32 %v584, %v616
    %v649 = vadd.f32 %v585, %v617
    %v650 = vadd.f32 %v586, %v618
    %v651 = vadd.f32 %v587, %v619
    %v652 = vadd.f32 %v588, %v620
    %v653 = vadd.f32 %v589, %v621
    %v654 = vadd.f32 %v590, %v622
    %v655 = vadd.f32 %v591, %v623
    %v656 = vadd.f32 %v592, %v624
    %v657 = vadd.f32 %v593, %v625
    %v658 = vadd.f32 %v594, %v626
    %v659 = vadd.f32 %v595, %v627
    %v660 = vadd.f32 %v596, %v628
    %v661 = vadd.f32 %v597, %v629
    %v662 = vadd.f32 %v598, %v630
    %v663 = vadd.f32 %v599, %v631
    %v664 = vadd.f32 %v600, %v632
    %v665 = vadd.f32 %v601, %v633
    %v666 = vadd.f32 %v602, %v634
    %v667 = vrsqrt.pop %v635
    %v668 = vrsqrt.pop %v636
    %v669 = vrsqrt.pop %v637
    %v670 = vrsqrt.pop %v638
    %v671 = vrsqrt.pop %v639
    %v672 = vrsqrt.pop %v640
    %v673 = vrsqrt.pop %v641
    %v674 = vrsqrt.pop %v642
    %v675 = vrsqrt.pop %v643
    %v676 = vrsqrt.pop %v644
    %v677 = vrsqrt.pop %v645
    %v678 = vrsqrt.pop %v646
    %v679 = vrsqrt.pop %v647
    %v680 = vrsqrt.pop %v648
    %v681 = vrsqrt.pop %v649
    %v682 = vrsqrt.pop %v650
    %v683 = vrsqrt.pop %v651
    %v684 = vrsqrt.pop %v652
    %v685 = vrsqrt.pop %v653
    %v686 = vrsqrt.pop %v654
    %v687 = vrsqrt.pop %v655
    %v688 = vrsqrt.pop %v656
    %v689 = vrsqrt.pop %v657
    %v690 = vrsqrt.pop %v658
    %v691 = vrsqrt.pop %v659
    %v692 = vrsqrt.pop %v660
    %v693 = vrsqrt.pop %v661
    %v694 = vrsqrt.pop %v662
    %v695 = vrsqrt.pop %v663
    %v696 = vrsqrt.pop %v664
    %v697 = vrsqrt.pop %v665
    %v698 = vrsqrt.pop %v666
    %v699 = vmul.f32 %v187, %v667
    %v700 = vmul.f32 %v188, %v668
    %v701 = vmul.f32 %v189, %v669
    %v702 = vmul.f32 %v190, %v670
    %v703 = vmul.f32 %v191, %v671
    %v704 = vmul.f32 %v192, %v672
    %v705 = vmul.f32 %v193, %v673
    %v706 = vmul.f32 %v194, %v674
    %v707 = vmul.f32 %v195, %v675
    %v708 = vmul.f32 %v196, %v676
    %v709 = vmul.f32 %v197, %v677
    %v710 = vmul.f32 %v198, %v678
    %v711 = vmul.f32 %v199, %v679
    %v712 = vmul.f32 %v200, %v680
    %v713 = vmul.f32 %v201, %v681
    %v714 = vmul.f32 %v202, %v682
    %v715 = vmul.f32 %v203, %v683
    %v716 = vmul.f32 %v204, %v684
    %v717 = vmul.f32 %v205, %v685
    %v718 = vmul.f32 %v206, %v686
    %v719 = vmul.f32 %v207, %v687
    %v720 = vmul.f32 %v208, %v688
    %v721 = vmul.f32 %v209, %v689
    %v722 = vmul.f32 %v210, %v690
    %v723 = vmul.f32 %v211, %v691
    %v724 = vmul.f32 %v212, %v692
    %v725 = vmul.f32 %v213, %v693
    %v726 = vmul.f32 %v214, %v694
    %v727 = vmul.f32 %v215, %v695
    %v728 = vmul.f32 %v216, %v696
    %v729 = vmul.f32 %v217, %v697
    %v730 = vmul.f32 %v218, %v698
    %v731 = vmul.f32 %v219, %v667
    %v732 = vmul.f32 %v220, %v668
    %v733 = vmul.f32 %v221, %v669
    %v734 = vmul.f32 %v222, %v670
    %v735 = vmul.f32 %v223, %v671
    %v736 = vmul.f32 %v224, %v672
    %v737 = vmul.f32 %v225, %v673
    %v738 = vmul.f32 %v226, %v674
    %v739 = vmul.f32 %v227, %v675
    %v740 = vmul.f32 %v228, %v676
    %v741 = vmul.f32 %v229, %v677
    %v742 = vmul.f32 %v230, %v678
    %v743 = vmul.f32 %v231, %v679
    %v744 = vmul.f32 %v232, %v680
    %v745 = vmul.f32 %v233, %v681
    %v746 = vmul.f32 %v234, %v682
    %v747 = vmul.f32 %v235, %v683
    %v748 = vmul.f32 %v236, %v684
    %v749 = vmul.f32 %v237, %v685
    %v750 = vmul.f32 %v238, %v686
    %v751 = vmul.f32 %v239, %v687
    %v752 = vmul.f32 %v240, %v688
    %v753 = vmul.f32 %v241, %v689
    %v754 = vmul.f32 %v242, %v690
    %v755 = vmul.f32 %v243, %v691
    %v756 = vmul.f32 %v244, %v692
    %v757 = vmul.f32 %v245, %v693
    %v758 = vmul.f32 %v246, %v694
    %v759 = vmul.f32 %v247, %v695
    %v760 = vmul.f32 %v248, %v696
    %v761 = vmul.f32 %v249, %v697
    %v762 = vmul.f32 %v250, %v698
    %v763 = vmul.f32 %v251, %v667
    %v764 = vmul.f32 %v252, %v668
    %v765 = vmul.f32 %v253, %v669
    %v766 = vmul.f32 %v254, %v670
    %v767 = vmul.f32 %v255, %v671
    %v768 = vmul.f32 %v256, %v672
    %v769 = vmul.f32 %v257, %v673
    %v770 = vmul.f32 %v258, %v674
    %v771 = vmul.f32 %v259, %v675
    %v772 = vmul.f32 %v260, %v676
    %v773 = vmul.f32 %v261, %v677
    %v774 = vmul.f32 %v262, %v678
    %v775 = vmul.f32 %v263, %v679
    %v776 = vmul.f32 %v264, %v680
    %v777 = vmul.f32 %v265, %v681
    %v778 = vmul.f32 %v266, %v682
    %v779 = vmul.f32 %v267, %v683
    %v780 = vmul.f32 %v268, %v684
    %v781 = vmul.f32 %v269, %v685
    %v782 = vmul.f32 %v270, %v686
    %v783 = vmul.f32 %v271, %v687
    %v784 = vmul.f32 %v272, %v688
    %v785 = vmul.f32 %v273, %v689
    %v786 = vmul.f32 %v274, %v690
    %v787 = vmul.f32 %v275, %v691
    %v788 = vmul.f32 %v276, %v692
    %v789 = vmul.f32 %v277, %v693
    %v790 = vmul.f32 %v278, %v694
    %v791 = vmul.f32 %v279, %v695
    %v792 = vmul.f32 %v280, %v696
    %v793 = vmul.f32 %v281, %v697
    %v794 = vmul.f32 %v282, %v698
    %v795 = vmul.f32 %v283, %v667
    %v796 = vmul.f32 %v284, %v668
    %v797 = vmul.f32 %v285, %v669
    %v798 = vmul.f32 %v286, %v670
    %v799 = vmul.f32 %v287, %v671
    %v800 = vmul.f32 %v288, %v672
    %v801 = vmul.f32 %v289, %v673
    %v802 = vmul.f32 %v290, %v674
    %v803 = vmul.f32 %v291, %v675
    %v804 = vmul.f32 %v292, %v676
    %v805 = vmul.f32 %v293, %v677
    %v806 = vmul.f32 %v294, %v678
    %v807 = vmul.f32 %v295, %v679
    %v808 = vmul.f32 %v296, %v680
    %v809 = vmul.f32 %v297, %v681
    %v810 = vmul.f32 %v298, %v682
    %v811 = vmul.f32 %v299, %v683
    %v812 = vmul.f32 %v300, %v684
    %v813 = vmul.f32 %v301, %v685
    %v814 = vmul.f32 %v302, %v686
    %v815 = vmul.f32 %v303, %v687
    %v816 = vmul.f32 %v304, %v688
    %v817 = vmul.f32 %v305, %v689
    %v818 = vmul.f32 %v306, %v690
    %v819 = vmul.f32 %v307, %v691
    %v820 = vmul.f32 %v308, %v692
    %v821 = vmul.f32 %v309, %v693
    %v822 = vmul.f32 %v310, %v694
    %v823 = vmul.f32 %v311, %v695
    %v824 = vmul.f32 %v312, %v696
    %v825 = vmul.f32 %v313, %v697
    %v826 = vmul.f32 %v314, %v698
    %v827 = vmul.f32 %v59, %v699
    %v828 = vmul.f32 %v60, %v700
    %v829 = vmul.f32 %v61, %v701
    %v830 = vmul.f32 %v62, %v702
    %v831 = vmul.f32 %v63, %v703
    %v832 = vmul.f32 %v64, %v704
    %v833 = vmul.f32 %v65, %v705
    %v834 = vmul.f32 %v66, %v706
    %v835 = vmul.f32 %v67, %v707
    %v836 = vmul.f32 %v68, %v708
    %v837 = vmul.f32 %v69, %v709
    %v838 = vmul.f32 %v70, %v710
    %v839 = vmul.f32 %v71, %v711
    %v840 = vmul.f32 %v72, %v712
    %v841 = vmul.f32 %v73, %v713
    %v842 = vmul.f32 %v74, %v714
    %v843 = vmul.f32 %v75, %v715
    %v844 = vmul.f32 %v76, %v716
    %v845 = vmul.f32 %v77, %v717
    %v846 = vmul.f32 %v78, %v718
    %v847 = vmul.f32 %v79, %v719
    %v848 = vmul.f32 %v80, %v720
    %v849 = vmul.f32 %v81, %v721
    %v850 = vmul.f32 %v82, %v722
    %v851 = vmul.f32 %v83, %v723
    %v852 = vmul.f32 %v84, %v724
    %v853 = vmul.f32 %v85, %v725
    %v854 = vmul.f32 %v86, %v726
    %v855 = vmul.f32 %v87, %v727
    %v856 = vmul.f32 %v88, %v728
    %v857 = vmul.f32 %v89, %v729
    %v858 = vmul.f32 %v90, %v730
    %v859 = vmul.f32 %v91, %v731
    %v860 = vmul.f32 %v92, %v732
    %v861 = vmul.f32 %v93, %v733
    %v862 = vmul.f32 %v94, %v734
    %v863 = vmul.f32 %v95, %v735
    %v864 = vmul.f32 %v96, %v736
    %v865 = vmul.f32 %v97, %v737
    %v866 = vmul.f32 %v98, %v738
    %v867 = vmul.f32 %v99, %v739
    %v868 = vmul.f32 %v100, %v740
    %v869 = vmul.f32 %v101, %v741
    %v870 = vmul.f32 %v102, %v742
    %v871 = vmul.f32 %v103, %v743
    %v872 = vmul.f32 %v104, %v744
    %v873 = vmul.f32 %v105, %v745
    %v874 = vmul.f32 %v106, %v746
    %v875 = vmul.f32 %v107, %v747
    %v876 = vmul.f32 %v108, %v748
    %v877 = vmul.f32 %v109, %v749
    %v878 = vmul.f32 %v110, %v750
    %v879 = vmul.f32 %v111, %v751
    %v880 = vmul.f32 %v112, %v752
    %v881 = vmul.f32 %v113, %v753
    %v882 = vmul.f32 %v114, %v754
    %v883 = vmul.f32 %v115, %v755
    %v884 = vmul.f32 %v116, %v756
    %v885 = vmul.f32 %v117, %v757
    %v886 = vmul.f32 %v118, %v758
    %v887 = vmul.f32 %v119, %v759
    %v888 = vmul.f32 %v120, %v760
    %v889 = vmul.f32 %v121, %v761
    %v890 = vmul.f32 %v122, %v762
    %v891 = vsub.f32 %v827, %v859
    %v892 = vsub.f32 %v828, %v860
    %v893 = vsub.f32 %v829, %v861
    %v894 = vsub.f32 %v830, %v862
    %v895 = vsub.f32 %v831, %v863
    %v896 = vsub.f32 %v832, %v864
    %v897 = vsub.f32 %v833, %v865
    %v898 = vsub.f32 %v834, %v866
    %v899 = vsub.f32 %v835, %v867
    %v900 = vsub.f32 %v836, %v868
    %v901 = vsub.f32 %v837, %v869
    %v902 = vsub.f32 %v838, %v870
    %v903 = vsub.f32 %v839, %v871
    %v904 = vsub.f32 %v840, %v872
    %v905 = vsub.f32 %v841, %v873
    %v906 = vsub.f32 %v842, %v874
    %v907 = vsub.f32 %v843, %v875
    %v908 = vsub.f32 %v844, %v876
    %v909 = vsub.f32 %v845, %v877
    %v910 = vsub.f32 %v846, %v878
    %v911 = vsub.f32 %v847, %v879
    %v912 = vsub.f32 %v848, %v880
    %v913 = vsub.f32 %v849, %v881
    %v914 = vsub.f32 %v850, %v882
    %v915 = vsub.f32 %v851, %v883
    %v916 = vsub.f32 %v852, %v884
    %v917 = vsub.f32 %v853, %v885
    %v918 = vsub.f32 %v854, %v886
    %v919 = vsub.f32 %v855, %v887
    %v920 = vsub.f32 %v856, %v888
    %v921 = vsub.f32 %v857, %v889
    %v922 = vsub.f32 %v858, %v890
    %v923 = vmul.f32 %v123, %v763
    %v924 = vmul.f32 %v124, %v764
    %v925 = vmul.f32 %v125, %v765
    %v926 = vmul.f32 %v126, %v766
    %v927 = vmul.f32 %v127, %v767
    %v928 = vmul.f32 %v128, %v768
    %v929 = vmul.f32 %v129, %v769
    %v930 = vmul.f32 %v130, %v770
    %v931 = vmul.f32 %v131, %v771
    %v932 = vmul.f32 %v132, %v772
    %v933 = vmul.f32 %v133, %v773
    %v934 = vmul.f32 %v134, %v774
    %v935 = vmul.f32 %v135, %v775
    %v936 = vmul.f32 %v136, %v776
    %v937 = vmul.f32 %v137, %v777
    %v938 = vmul.f32 %v138, %v778
    %v939 = vmul.f32 %v139, %v779
    %v940 = vmul.f32 %v140, %v780
    %v941 = vmul.f32 %v141, %v781
    %v942 = vmul.f32 %v142, %v782
    %v943 = vmul.f32 %v143, %v783
    %v944 = vmul.f32 %v144, %v784
    %v945 = vmul.f32 %v145, %v785
    %v946 = vmul.f32 %v146, %v786
    %v947 = vmul.f32 %v147, %v787
    %v948 = vmul.f32 %v148, %v788
    %v949 = vmul.f32 %v149, %v789
    %v950 = vmul.f32 %v150, %v790
    %v951 = vmul.f32 %v151, %v791
    %v952 = vmul.f32 %v152, %v792
    %v953 = vmul.f32 %v153, %v793
    %v954 = vmul.f32 %v154, %v794
    %v955 = vsub.f32 %v891, %v923
    %v956 = vsub.f32 %v892, %v924
    %v957 = vsub.f32 %v893, %v925
    %v958 = vsub.f32 %v894, %v926
    %v959 = vsub.f32 %v895, %v927
    %v960 = vsub.f32 %v896, %v928
    %v961 = vsub.f32 %v897, %v929
    %v962 = vsub.f32 %v898, %v930
    %v963 = vsub.f32 %v899, %v931
    %v964 = vsub.f32 %v900, %v932
    %v965 = vsub.f32 %v901, %v933
    %v966 = vsub.f32 %v902, %v934
    %v967 = vsub.f32 %v903, %v935
    %v968 = vsub.f32 %v904, %v936
    %v969 = vsub.f32 %v905, %v937
    %v970 = vsub.f32 %v906, %v938
    %v971 = vsub.f32 %v907, %v939
    %v972 = vsub.f32 %v908, %v940
    %v973 = vsub.f32 %v909, %v941
    %v974 = vsub.f32 %v910, %v942
    %v975 = vsub.f32 %v911, %v943
    %v976 = vsub.f32 %v912, %v944
    %v977 = vsub.f32 %v913, %v945
    %v978 = vsub.f32 %v914, %v946
    %v979 = vsub.f32 %v915, %v947
    %v980 = vsub.f32 %v916, %v948
    %v981 = vsub.f32 %v917, %v949
    %v982 = vsub.f32 %v918, %v950
    %v983 = vsub.f32 %v919, %v951
    %v984 = vsub.f32 %v920, %v952
    %v985 = vsub.f32 %v921, %v953
    %v986 = vsub.f32 %v922, %v954
    %v987 = vmul.f32 %v155, %v795
    %v988 = vmul.f32 %v156, %v796
    %v989 = vmul.f32 %v157, %v797
    %v990 = vmul.f32 %v158, %v798
    %v991 = vmul.f32 %v159, %v799
    %v992 = vmul.f32 %v160, %v800
    %v993 = vmul.f32 %v161, %v801
    %v994 = vmul.f32 %v162, %v802
    %v995 = vmul.f32 %v163, %v803
    %v996 = vmul.f32 %v164, %v804
    %v997 = vmul.f32 %v165, %v805
    %v998 = vmul.f32 %v166, %v806
    %v999 = vmul.f32 %v167, %v807
    %v1000 = vmul.f32 %v168, %v808
    %v1001 = vmul.f32 %v169, %v809
    %v1002 = vmul.f32 %v170, %v810
    %v1003 = vmul.f32 %v171, %v811
    %v1004 = vmul.f32 %v172, %v812
    %v1005 = vmul.f32 %v173, %v813
    %v1006 = vmul.f32 %v174, %v814
    %v1007 = vmul.f32 %v175, %v815
    %v1008 = vmul.f32 %v176, %v816
    %v1009 = vmul.f32 %v177, %v817
    %v1010 = vmul.f32 %v178, %v818
    %v1011 = vmul.f32 %v179, %v819
    %v1012 = vmul.f32 %v180, %v820
    %v1013 = vmul.f32 %v181, %v821
    %v1014 = vmul.f32 %v182, %v822
    %v1015 = vmul.f32 %v183, %v823
    %v1016 = vmul.f32 %v184, %v824
    %v1017 = vmul.f32 %v185, %v825
    %v1018 = vmul.f32 %v186, %v826
    %v1019 = vsub.f32 %v955, %v987
    %v1020 = vsub.f32 %v956, %v988
    %v1021 = vsub.f32 %v957, %v989
    %v1022 = vsub.f32 %v958, %v990
    %v1023 = vsub.f32 %v959, %v991
    %v1024 = vsub.f32 %v960, %v992
    %v1025 = vsub.f32 %v961, %v993
    %v1026 = vsub.f32 %v962, %v994
    %v1027 = vsub.f32 %v963, %v995
    %v1028 = vsub.f32 %v964, %v996
    %v1029 = vsub.f32 %v965, %v997
    %v1030 = vsub.f32 %v966, %v998
    %v1031 = vsub.f32 %v967, %v999
    %v1032 = vsub.f32 %v968, %v1000
    %v1033 = vsub.f32 %v969, %v1001
    %v1034 = vsub.f32 %v970, %v1002
    %v1035 = vsub.f32 %v971, %v1003
    %v1036 = vsub.f32 %v972, %v1004
    %v1037 = vsub.f32 %v973, %v1005
    %v1038 = vsub.f32 %v974, %v1006
    %v1039 = vsub.f32 %v975, %v1007
    %v1040 = vsub.f32 %v976, %v1008
    %v1041 = vsub.f32 %v977, %v1009
    %v1042 = vsub.f32 %v978, %v1010
    %v1043 = vsub.f32 %v979, %v1011
    %v1044 = vsub.f32 %v980, %v1012
    %v1045 = vsub.f32 %v981, %v1013
    %v1046 = vsub.f32 %v982, %v1014
    %v1047 = vsub.f32 %v983, %v1015
    %v1048 = vsub.f32 %v984, %v1016
    %v1049 = vsub.f32 %v985, %v1017
    %v1050 = vsub.f32 %v986, %v1018
    %v1051 = vmul.f32 %v59, %v731
    %v1052 = vmul.f32 %v60, %v732
    %v1053 = vmul.f32 %v61, %v733
    %v1054 = vmul.f32 %v62, %v734
    %v1055 = vmul.f32 %v63, %v735
    %v1056 = vmul.f32 %v64, %v736
    %v1057 = vmul.f32 %v65, %v737
    %v1058 = vmul.f32 %v66, %v738
    %v1059 = vmul.f32 %v67, %v739
    %v1060 = vmul.f32 %v68, %v740
    %v1061 = vmul.f32 %v69, %v741
    %v1062 = vmul.f32 %v70, %v742
    %v1063 = vmul.f32 %v71, %v743
    %v1064 = vmul.f32 %v72, %v744
    %v1065 = vmul.f32 %v73, %v745
    %v1066 = vmul.f32 %v74, %v746
    %v1067 = vmul.f32 %v75, %v747
    %v1068 = vmul.f32 %v76, %v748
    %v1069 = vmul.f32 %v77, %v749
    %v1070 = vmul.f32 %v78, %v750
    %v1071 = vmul.f32 %v79, %v751
    %v1072 = vmul.f32 %v80, %v752
    %v1073 = vmul.f32 %v81, %v753
    %v1074 = vmul.f32 %v82, %v754
    %v1075 = vmul.f32 %v83, %v755
    %v1076 = vmul.f32 %v84, %v756
    %v1077 = vmul.f32 %v85, %v757
    %v1078 = vmul.f32 %v86, %v758
    %v1079 = vmul.f32 %v87, %v759
    %v1080 = vmul.f32 %v88, %v760
    %v1081 = vmul.f32 %v89, %v761
    %v1082 = vmul.f32 %v90, %v762
    %v1083 = vmul.f32 %v699, %v91
    %v1084 = vmul.f32 %v700, %v92
    %v1085 = vmul.f32 %v701, %v93
    %v1086 = vmul.f32 %v702, %v94
    %v1087 = vmul.f32 %v703, %v95
    %v1088 = vmul.f32 %v704, %v96
    %v1089 = vmul.f32 %v705, %v97
    %v1090 = vmul.f32 %v706, %v98
    %v1091 = vmul.f32 %v707, %v99
    %v1092 = vmul.f32 %v708, %v100
    %v1093 = vmul.f32 %v709, %v101
    %v1094 = vmul.f32 %v710, %v102
    %v1095 = vmul.f32 %v711, %v103
    %v1096 = vmul.f32 %v712, %v104
    %v1097 = vmul.f32 %v713, %v105
    %v1098 = vmul.f32 %v714, %v106
    %v1099 = vmul.f32 %v715, %v107
    %v1100 = vmul.f32 %v716, %v108
    %v1101 = vmul.f32 %v717, %v109
    %v1102 = vmul.f32 %v718, %v110
    %v1103 = vmul.f32 %v719, %v111
    %v1104 = vmul.f32 %v720, %v112
    %v1105 = vmul.f32 %v721, %v113
    %v1106 = vmul.f32 %v722, %v114
    %v1107 = vmul.f32 %v723, %v115
    %v1108 = vmul.f32 %v724, %v116
    %v1109 = vmul.f32 %v725, %v117
    %v1110 = vmul.f32 %v726, %v118
    %v1111 = vmul.f32 %v727, %v119
    %v1112 = vmul.f32 %v728, %v120
    %v1113 = vmul.f32 %v729, %v121
    %v1114 = vmul.f32 %v730, %v122
    %v1115 = vadd.f32 %v1051, %v1083
    %v1116 = vadd.f32 %v1052, %v1084
    %v1117 = vadd.f32 %v1053, %v1085
    %v1118 = vadd.f32 %v1054, %v1086
    %v1119 = vadd.f32 %v1055, %v1087
    %v1120 = vadd.f32 %v1056, %v1088
    %v1121 = vadd.f32 %v1057, %v1089
    %v1122 = vadd.f32 %v1058, %v1090
    %v1123 = vadd.f32 %v1059, %v1091
    %v1124 = vadd.f32 %v1060, %v1092
    %v1125 = vadd.f32 %v1061, %v1093
    %v1126 = vadd.f32 %v1062, %v1094
    %v1127 = vadd.f32 %v1063, %v1095
    %v1128 = vadd.f32 %v1064, %v1096
    %v1129 = vadd.f32 %v1065, %v1097
    %v1130 = vadd.f32 %v1066, %v1098
    %v1131 = vadd.f32 %v1067, %v1099
    %v1132 = vadd.f32 %v1068, %v1100
    %v1133 = vadd.f32 %v1069, %v1101
    %v1134 = vadd.f32 %v1070, %v1102
    %v1135 = vadd.f32 %v1071, %v1103
    %v1136 = vadd.f32 %v1072, %v1104
    %v1137 = vadd.f32 %v1073, %v1105
    %v1138 = vadd.f32 %v1074, %v1106
    %v1139 = vadd.f32 %v1075, %v1107
    %v1140 = vadd.f32 %v1076, %v1108
    %v1141 = vadd.f32 %v1077, %v1109
    %v1142 = vadd.f32 %v1078, %v1110
    %v1143 = vadd.f32 %v1079, %v1111
    %v1144 = vadd.f32 %v1080, %v1112
    %v1145 = vadd.f32 %v1081, %v1113
    %v1146 = vadd.f32 %v1082, %v1114
    %v1147 = vmul.f32 %v123, %v795
    %v1148 = vmul.f32 %v124, %v796
    %v1149 = vmul.f32 %v125, %v797
    %v1150 = vmul.f32 %v126, %v798
    %v1151 = vmul.f32 %v127, %v799
    %v1152 = vmul.f32 %v128, %v800
    %v1153 = vmul.f32 %v129, %v801
    %v1154 = vmul.f32 %v130, %v802
    %v1155 = vmul.f32 %v131, %v803
    %v1156 = vmul.f32 %v132, %v804
    %v1157 = vmul.f32 %v133, %v805
    %v1158 = vmul.f32 %v134, %v806
    %v1159 = vmul.f32 %v135, %v807
    %v1160 = vmul.f32 %v136, %v808
    %v1161 = vmul.f32 %v137, %v809
    %v1162 = vmul.f32 %v138, %v810
    %v1163 = vmul.f32 %v139, %v811
    %v1164 = vmul.f32 %v140, %v812
    %v1165 = vmul.f32 %v141, %v813
    %v1166 = vmul.f32 %v142, %v814
    %v1167 = vmul.f32 %v143, %v815
    %v1168 = vmul.f32 %v144, %v816
    %v1169 = vmul.f32 %v145, %v817
    %v1170 = vmul.f32 %v146, %v818
    %v1171 = vmul.f32 %v147, %v819
    %v1172 = vmul.f32 %v148, %v820
    %v1173 = vmul.f32 %v149, %v821
    %v1174 = vmul.f32 %v150, %v822
    %v1175 = vmul.f32 %v151, %v823
    %v1176 = vmul.f32 %v152, %v824
    %v1177 = vmul.f32 %v153, %v825
    %v1178 = vmul.f32 %v154, %v826
    %v1179 = vadd.f32 %v1115, %v1147
    %v1180 = vadd.f32 %v1116, %v1148
    %v1181 = vadd.f32 %v1117, %v1149
    %v1182 = vadd.f32 %v1118, %v1150
    %v1183 = vadd.f32 %v1119, %v1151
    %v1184 = vadd.f32 %v1120, %v1152
    %v1185 = vadd.f32 %v1121, %v1153
    %v1186 = vadd.f32 %v1122, %v1154
    %v1187 = vadd.f32 %v1123, %v1155
    %v1188 = vadd.f32 %v1124, %v1156
    %v1189 = vadd.f32 %v1125, %v1157
    %v1190 = vadd.f32 %v1126, %v1158
    %v1191 = vadd.f32 %v1127, %v1159
    %v1192 = vadd.f32 %v1128, %v1160
    %v1193 = vadd.f32 %v1129, %v1161
    %v1194 = vadd.f32 %v1130, %v1162
    %v1195 = vadd.f32 %v1131, %v1163
    %v1196 = vadd.f32 %v1132, %v1164
    %v1197 = vadd.f32 %v1133, %v1165
    %v1198 = vadd.f32 %v1134, %v1166
    %v1199 = vadd.f32 %v1135, %v1167
    %v1200 = vadd.f32 %v1136, %v1168
    %v1201 = vadd.f32 %v1137, %v1169
    %v1202 = vadd.f32 %v1138, %v1170
    %v1203 = vadd.f32 %v1139, %v1171
    %v1204 = vadd.f32 %v1140, %v1172
    %v1205 = vadd.f32 %v1141, %v1173
    %v1206 = vadd.f32 %v1142, %v1174
    %v1207 = vadd.f32 %v1143, %v1175
    %v1208 = vadd.f32 %v1144, %v1176
    %v1209 = vadd.f32 %v1145, %v1177
    %v1210 = vadd.f32 %v1146, %v1178
    %v1211 = vmul.f32 %v763, %v155
    %v1212 = vmul.f32 %v764, %v156
    %v1213 = vmul.f32 %v765, %v157
    %v1214 = vmul.f32 %v766, %v158
    %v1215 = vmul.f32 %v767, %v159
    %v1216 = vmul.f32 %v768, %v160
    %v1217 = vmul.f32 %v769, %v161
    %v1218 = vmul.f32 %v770, %v162
    %v1219 = vmul.f32 %v771, %v163
    %v1220 = vmul.f32 %v772, %v164
    %v1221 = vmul.f32 %v773, %v165
    %v1222 = vmul.f32 %v774, %v166
    %v1223 = vmul.f32 %v775, %v167
    %v1224 = vmul.f32 %v776, %v168
    %v1225 = vmul.f32 %v777, %v169
    %v1226 = vmul.f32 %v778, %v170
    %v1227 = vmul.f32 %v779, %v171
    %v1228 = vmul.f32 %v780, %v172
    %v1229 = vmul.f32 %v781, %v173
    %v1230 = vmul.f32 %v782, %v174
    %v1231 = vmul.f32 %v783, %v175
    %v1232 = vmul.f32 %v784, %v176
    %v1233 = vmul.f32 %v785, %v177
    %v1234 = vmul.f32 %v786, %v178
    %v1235 = vmul.f32 %v787, %v179
    %v1236 = vmul.f32 %v788, %v180
    %v1237 = vmul.f32 %v789, %v181
    %v1238 = vmul.f32 %v790, %v182
    %v1239 = vmul.f32 %v791, %v183
    %v1240 = vmul.f32 %v792, %v184
    %v1241 = vmul.f32 %v793, %v185
    %v1242 = vmul.f32 %v794, %v186
    %v1243 = vsub.f32 %v1179, %v1211
    %v1244 = vsub.f32 %v1180, %v1212
    %v1245 = vsub.f32 %v1181, %v1213
    %v1246 = vsub.f32 %v1182, %v1214
    %v1247 = vsub.f32 %v1183, %v1215
    %v1248 = vsub.f32 %v1184, %v1216
    %v1249 = vsub.f32 %v1185, %v1217
    %v1250 = vsub.f32 %v1186, %v1218
    %v1251 = vsub.f32 %v1187, %v1219
    %v1252 = vsub.f32 %v1188, %v1220
    %v1253 = vsub.f32 %v1189, %v1221
    %v1254 = vsub.f32 %v1190, %v1222
    %v1255 = vsub.f32 %v1191, %v1223
    %v1256 = vsub.f32 %v1192, %v1224
    %v1257 = vsub.f32 %v1193, %v1225
    %v1258 = vsub.f32 %v1194, %v1226
    %v1259 = vsub.f32 %v1195, %v1227
    %v1260 = vsub.f32 %v1196, %v1228
    %v1261 = vsub.f32 %v1197, %v1229
    %v1262 = vsub.f32 %v1198, %v1230
    %v1263 = vsub.f32 %v1199, %v1231
    %v1264 = vsub.f32 %v1200, %v1232
    %v1265 = vsub.f32 %v1201, %v1233
    %v1266 = vsub.f32 %v1202, %v1234
    %v1267 = vsub.f32 %v1203, %v1235
    %v1268 = vsub.f32 %v1204, %v1236
    %v1269 = vsub.f32 %v1205, %v1237
    %v1270 = vsub.f32 %v1206, %v1238
    %v1271 = vsub.f32 %v1207, %v1239
    %v1272 = vsub.f32 %v1208, %v1240
    %v1273 = vsub.f32 %v1209, %v1241
    %v1274 = vsub.f32 %v1210, %v1242
    %v1275 = vmul.f32 %v59, %v763
    %v1276 = vmul.f32 %v60, %v764
    %v1277 = vmul.f32 %v61, %v765
    %v1278 = vmul.f32 %v62, %v766
    %v1279 = vmul.f32 %v63, %v767
    %v1280 = vmul.f32 %v64, %v768
    %v1281 = vmul.f32 %v65, %v769
    %v1282 = vmul.f32 %v66, %v770
    %v1283 = vmul.f32 %v67, %v771
    %v1284 = vmul.f32 %v68, %v772
    %v1285 = vmul.f32 %v69, %v773
    %v1286 = vmul.f32 %v70, %v774
    %v1287 = vmul.f32 %v71, %v775
    %v1288 = vmul.f32 %v72, %v776
    %v1289 = vmul.f32 %v73, %v777
    %v1290 = vmul.f32 %v74, %v778
    %v1291 = vmul.f32 %v75, %v779
    %v1292 = vmul.f32 %v76, %v780
    %v1293 = vmul.f32 %v77, %v781
    %v1294 = vmul.f32 %v78, %v782
    %v1295 = vmul.f32 %v79, %v783
    %v1296 = vmul.f32 %v80, %v784
    %v1297 = vmul.f32 %v81, %v785
    %v1298 = vmul.f32 %v82, %v786
    %v1299 = vmul.f32 %v83, %v787
    %v1300 = vmul.f32 %v84, %v788
    %v1301 = vmul.f32 %v85, %v789
    %v1302 = vmul.f32 %v86, %v790
    %v1303 = vmul.f32 %v87, %v791
    %v1304 = vmul.f32 %v88, %v792
    %v1305 = vmul.f32 %v89, %v793
    %v1306 = vmul.f32 %v90, %v794
    %v1307 = vmul.f32 %v699, %v123
    %v1308 = vmul.f32 %v700, %v124
    %v1309 = vmul.f32 %v701, %v125
    %v1310 = vmul.f32 %v702, %v126
    %v1311 = vmul.f32 %v703, %v127
    %v1312 = vmul.f32 %v704, %v128
    %v1313 = vmul.f32 %v705, %v129
    %v1314 = vmul.f32 %v706, %v130
    %v1315 = vmul.f32 %v707, %v131
    %v1316 = vmul.f32 %v708, %v132
    %v1317 = vmul.f32 %v709, %v133
    %v1318 = vmul.f32 %v710, %v134
    %v1319 = vmul.f32 %v711, %v135
    %v1320 = vmul.f32 %v712, %v136
    %v1321 = vmul.f32 %v713, %v137
    %v1322 = vmul.f32 %v714, %v138
    %v1323 = vmul.f32 %v715, %v139
    %v1324 = vmul.f32 %v716, %v140
    %v1325 = vmul.f32 %v717, %v141
    %v1326 = vmul.f32 %v718, %v142
    %v1327 = vmul.f32 %v719, %v143
    %v1328 = vmul.f32 %v720, %v144
    %v1329 = vmul.f32 %v721, %v145
    %v1330 = vmul.f32 %v722, %v146
    %v1331 = vmul.f32 %v723, %v147
    %v1332 = vmul.f32 %v724, %v148
    %v1333 = vmul.f32 %v725, %v149
    %v1334 = vmul.f32 %v726, %v150
    %v1335 = vmul.f32 %v727, %v151
    %v1336 = vmul.f32 %v728, %v152
    %v1337 = vmul.f32 %v729, %v153
    %v1338 = vmul.f32 %v730, %v154
    %v1339 = vadd.f32 %v1275, %v1307
    %v1340 = vadd.f32 %v1276, %v1308
    %v1341 = vadd.f32 %v1277, %v1309
    %v1342 = vadd.f32 %v1278, %v1310
    %v1343 = vadd.f32 %v1279, %v1311
    %v1344 = vadd.f32 %v1280, %v1312
    %v1345 = vadd.f32 %v1281, %v1313
    %v1346 = vadd.f32 %v1282, %v1314
    %v1347 = vadd.f32 %v1283, %v1315
    %v1348 = vadd.f32 %v1284, %v1316
    %v1349 = vadd.f32 %v1285, %v1317
    %v1350 = vadd.f32 %v1286, %v1318
    %v1351 = vadd.f32 %v1287, %v1319
    %v1352 = vadd.f32 %v1288, %v1320
    %v1353 = vadd.f32 %v1289, %v1321
    %v1354 = vadd.f32 %v1290, %v1322
    %v1355 = vadd.f32 %v1291, %v1323
    %v1356 = vadd.f32 %v1292, %v1324
    %v1357 = vadd.f32 %v1293, %v1325
    %v1358 = vadd.f32 %v1294, %v1326
    %v1359 = vadd.f32 %v1295, %v1327
    %v1360 = vadd.f32 %v1296, %v1328
    %v1361 = vadd.f32 %v1297, %v1329
    %v1362 = vadd.f32 %v1298, %v1330
    %v1363 = vadd.f32 %v1299, %v1331
    %v1364 = vadd.f32 %v1300, %v1332
    %v1365 = vadd.f32 %v1301, %v1333
    %v1366 = vadd.f32 %v1302, %v1334
    %v1367 = vadd.f32 %v1303, %v1335
    %v1368 = vadd.f32 %v1304, %v1336
    %v1369 = vadd.f32 %v1305, %v1337
    %v1370 = vadd.f32 %v1306, %v1338
    %v1371 = vmul.f32 %v155, %v731
    %v1372 = vmul.f32 %v156, %v732
    %v1373 = vmul.f32 %v157, %v733
    %v1374 = vmul.f32 %v158, %v734
    %v1375 = vmul.f32 %v159, %v735
    %v1376 = vmul.f32 %v160, %v736
    %v1377 = vmul.f32 %v161, %v737
    %v1378 = vmul.f32 %v162, %v738
    %v1379 = vmul.f32 %v163, %v739
    %v1380 = vmul.f32 %v164, %v740
    %v1381 = vmul.f32 %v165, %v741
    %v1382 = vmul.f32 %v166, %v742
    %v1383 = vmul.f32 %v167, %v743
    %v1384 = vmul.f32 %v168, %v744
    %v1385 = vmul.f32 %v169, %v745
    %v1386 = vmul.f32 %v170, %v746
    %v1387 = vmul.f32 %v171, %v747
    %v1388 = vmul.f32 %v172, %v748
    %v1389 = vmul.f32 %v173, %v749
    %v1390 = vmul.f32 %v174, %v750
    %v1391 = vmul.f32 %v175, %v751
    %v1392 = vmul.f32 %v176, %v752
    %v1393 = vmul.f32 %v177, %v753
    %v1394 = vmul.f32 %v178, %v754
    %v1395 = vmul.f32 %v179, %v755
    %v1396 = vmul.f32 %v180, %v756
    %v1397 = vmul.f32 %v181, %v757
    %v1398 = vmul.f32 %v182, %v758
    %v1399 = vmul.f32 %v183, %v759
    %v1400 = vmul.f32 %v184, %v760
    %v1401 = vmul.f32 %v185, %v761
    %v1402 = vmul.f32 %v186, %v762
    %v1403 = vadd.f32 %v1339, %v1371
    %v1404 = vadd.f32 %v1340, %v1372
    %v1405 = vadd.f32 %v1341, %v1373
    %v1406 = vadd.f32 %v1342, %v1374
    %v1407 = vadd.f32 %v1343, %v1375
    %v1408 = vadd.f32 %v1344, %v1376
    %v1409 = vadd.f32 %v1345, %v1377
    %v1410 = vadd.f32 %v1346, %v1378
    %v1411 = vadd.f32 %v1347, %v1379
    %v1412 = vadd.f32 %v1348, %v1380
    %v1413 = vadd.f32 %v1349, %v1381
    %v1414 = vadd.f32 %v1350, %v1382
    %v1415 = vadd.f32 %v1351, %v1383
    %v1416 = vadd.f32 %v1352, %v1384
    %v1417 = vadd.f32 %v1353, %v1385
    %v1418 = vadd.f32 %v1354, %v1386
    %v1419 = vadd.f32 %v1355, %v1387
    %v1420 = vadd.f32 %v1356, %v1388
    %v1421 = vadd.f32 %v1357, %v1389
    %v1422 = vadd.f32 %v1358, %v1390
    %v1423 = vadd.f32 %v1359, %v1391
    %v1424 = vadd.f32 %v1360, %v1392
    %v1425 = vadd.f32 %v1361, %v1393
    %v1426 = vadd.f32 %v1362, %v1394
    %v1427 = vadd.f32 %v1363, %v1395
    %v1428 = vadd.f32 %v1364, %v1396
    %v1429 = vadd.f32 %v1365, %v1397
    %v1430 = vadd.f32 %v1366, %v1398
    %v1431 = vadd.f32 %v1367, %v1399
    %v1432 = vadd.f32 %v1368, %v1400
    %v1433 = vadd.f32 %v1369, %v1401
    %v1434 = vadd.f32 %v1370, %v1402
    %v1435 = vmul.f32 %v795, %v91
    %v1436 = vmul.f32 %v796, %v92
    %v1437 = vmul.f32 %v797, %v93
    %v1438 = vmul.f32 %v798, %v94
    %v1439 = vmul.f32 %v799, %v95
    %v1440 = vmul.f32 %v800, %v96
    %v1441 = vmul.f32 %v801, %v97
    %v1442 = vmul.f32 %v802, %v98
    %v1443 = vmul.f32 %v803, %v99
    %v1444 = vmul.f32 %v804, %v100
    %v1445 = vmul.f32 %v805, %v101
    %v1446 = vmul.f32 %v806, %v102
    %v1447 = vmul.f32 %v807, %v103
    %v1448 = vmul.f32 %v808, %v104
    %v1449 = vmul.f32 %v809, %v105
    %v1450 = vmul.f32 %v810, %v106
    %v1451 = vmul.f32 %v811, %v107
    %v1452 = vmul.f32 %v812, %v108
    %v1453 = vmul.f32 %v813, %v109
    %v1454 = vmul.f32 %v814, %v110
    %v1455 = vmul.f32 %v815, %v111
    %v1456 = vmul.f32 %v816, %v112
    %v1457 = vmul.f32 %v817, %v113
    %v1458 = vmul.f32 %v818, %v114
    %v1459 = vmul.f32 %v819, %v115
    %v1460 = vmul.f32 %v820, %v116
    %v1461 = vmul.f32 %v821, %v117
    %v1462 = vmul.f32 %v822, %v118
    %v1463 = vmul.f32 %v823, %v119
    %v1464 = vmul.f32 %v824, %v120
    %v1465 = vmul.f32 %v825, %v121
    %v1466 = vmul.f32 %v826, %v122
    %v1467 = vsub.f32 %v1403, %v1435
    %v1468 = vsub.f32 %v1404, %v1436
    %v1469 = vsub.f32 %v1405, %v1437
    %v1470 = vsub.f32 %v1406, %v1438
    %v1471 = vsub.f32 %v1407, %v1439
    %v1472 = vsub.f32 %v1408, %v1440
    %v1473 = vsub.f32 %v1409, %v1441
    %v1474 = vsub.f32 %v1410, %v1442
    %v1475 = vsub.f32 %v1411, %v1443
    %v1476 = vsub.f32 %v1412, %v1444
    %v1477 = vsub.f32 %v1413, %v1445
    %v1478 = vsub.f32 %v1414, %v1446
    %v1479 = vsub.f32 %v1415, %v1447
    %v1480 = vsub.f32 %v1416, %v1448
    %v1481 = vsub.f32 %v1417, %v1449
    %v1482 = vsub.f32 %v1418, %v1450
    %v1483 = vsub.f32 %v1419, %v1451
    %v1484 = vsub.f32 %v1420, %v1452
    %v1485 = vsub.f32 %v1421, %v1453
    %v1486 = vsub.f32 %v1422, %v1454
    %v1487 = vsub.f32 %v1423, %v1455
    %v1488 = vsub.f32 %v1424, %v1456
    %v1489 = vsub.f32 %v1425, %v1457
    %v1490 = vsub.f32 %v1426, %v1458
    %v1491 = vsub.f32 %v1427, %v1459
    %v1492 = vsub.f32 %v1428, %v1460
    %v1493 = vsub.f32 %v1429, %v1461
    %v1494 = vsub.f32 %v1430, %v1462
    %v1495 = vsub.f32 %v1431, %v1463
    %v1496 = vsub.f32 %v1432, %v1464
    %v1497 = vsub.f32 %v1433, %v1465
    %v1498 = vsub.f32 %v1434, %v1466
    %v1499 = vmul.f32 %v59, %v795
    %v1500 = vmul.f32 %v60, %v796
    %v1501 = vmul.f32 %v61, %v797
    %v1502 = vmul.f32 %v62, %v798
    %v1503 = vmul.f32 %v63, %v799
    %v1504 = vmul.f32 %v64, %v800
    %v1505 = vmul.f32 %v65, %v801
    %v1506 = vmul.f32 %v66, %v802
    %v1507 = vmul.f32 %v67, %v803
    %v1508 = vmul.f32 %v68, %v804
    %v1509 = vmul.f32 %v69, %v805
    %v1510 = vmul.f32 %v70, %v806
    %v1511 = vmul.f32 %v71, %v807
    %v1512 = vmul.f32 %v72, %v808
    %v1513 = vmul.f32 %v73, %v809
    %v1514 = vmul.f32 %v74, %v810
    %v1515 = vmul.f32 %v75, %v811
    %v1516 = vmul.f32 %v76, %v812
    %v1517 = vmul.f32 %v77, %v813
    %v1518 = vmul.f32 %v78, %v814
    %v1519 = vmul.f32 %v79, %v815
    %v1520 = vmul.f32 %v80, %v816
    %v1521 = vmul.f32 %v81, %v817
    %v1522 = vmul.f32 %v82, %v818
    %v1523 = vmul.f32 %v83, %v819
    %v1524 = vmul.f32 %v84, %v820
    %v1525 = vmul.f32 %v85, %v821
    %v1526 = vmul.f32 %v86, %v822
    %v1527 = vmul.f32 %v87, %v823
    %v1528 = vmul.f32 %v88, %v824
    %v1529 = vmul.f32 %v89, %v825
    %v1530 = vmul.f32 %v90, %v826
    %v1531 = vmul.f32 %v699, %v155
    %v1532 = vmul.f32 %v700, %v156
    %v1533 = vmul.f32 %v701, %v157
    %v1534 = vmul.f32 %v702, %v158
    %v1535 = vmul.f32 %v703, %v159
    %v1536 = vmul.f32 %v704, %v160
    %v1537 = vmul.f32 %v705, %v161
    %v1538 = vmul.f32 %v706, %v162
    %v1539 = vmul.f32 %v707, %v163
    %v1540 = vmul.f32 %v708, %v164
    %v1541 = vmul.f32 %v709, %v165
    %v1542 = vmul.f32 %v710, %v166
    %v1543 = vmul.f32 %v711, %v167
    %v1544 = vmul.f32 %v712, %v168
    %v1545 = vmul.f32 %v713, %v169
    %v1546 = vmul.f32 %v714, %v170
    %v1547 = vmul.f32 %v715, %v171
    %v1548 = vmul.f32 %v716, %v172
    %v1549 = vmul.f32 %v717, %v173
    %v1550 = vmul.f32 %v718, %v174
    %v1551 = vmul.f32 %v719, %v175
    %v1552 = vmul.f32 %v720, %v176
    %v1553 = vmul.f32 %v721, %v177
    %v1554 = vmul.f32 %v722, %v178
    %v1555 = vmul.f32 %v723, %v179
    %v1556 = vmul.f32 %v724, %v180
    %v1557 = vmul.f32 %v725, %v181
    %v1558 = vmul.f32 %v726, %v182
    %v1559 = vmul.f32 %v727, %v183
    %v1560 = vmul.f32 %v728, %v184
    %v1561 = vmul.f32 %v729, %v185
    %v1562 = vmul.f32 %v730, %v186
    %v1563 = vadd.f32 %v1499, %v1531
    %v1564 = vadd.f32 %v1500, %v1532
    %v1565 = vadd.f32 %v1501, %v1533
    %v1566 = vadd.f32 %v1502, %v1534
    %v1567 = vadd.f32 %v1503, %v1535
    %v1568 = vadd.f32 %v1504, %v1536
    %v1569 = vadd.f32 %v1505, %v1537
    %v1570 = vadd.f32 %v1506, %v1538
    %v1571 = vadd.f32 %v1507, %v1539
    %v1572 = vadd.f32 %v1508, %v1540
    %v1573 = vadd.f32 %v1509, %v1541
    %v1574 = vadd.f32 %v1510, %v1542
    %v1575 = vadd.f32 %v1511, %v1543
    %v1576 = vadd.f32 %v1512, %v1544
    %v1577 = vadd.f32 %v1513, %v1545
    %v1578 = vadd.f32 %v1514, %v1546
    %v1579 = vadd.f32 %v1515, %v1547
    %v1580 = vadd.f32 %v1516, %v1548
    %v1581 = vadd.f32 %v1517, %v1549
    %v1582 = vadd.f32 %v1518, %v1550
    %v1583 = vadd.f32 %v1519, %v1551
    %v1584 = vadd.f32 %v1520, %v1552
    %v1585 = vadd.f32 %v1521, %v1553
    %v1586 = vadd.f32 %v1522, %v1554
    %v1587 = vadd.f32 %v1523, %v1555
    %v1588 = vadd.f32 %v1524, %v1556
    %v1589 = vadd.f32 %v1525, %v1557
    %v1590 = vadd.f32 %v1526, %v1558
    %v1591 = vadd.f32 %v1527, %v1559
    %v1592 = vadd.f32 %v1528, %v1560
    %v1593 = vadd.f32 %v1529, %v1561
    %v1594 = vadd.f32 %v1530, %v1562
    %v1595 = vmul.f32 %v91, %v763
    %v1596 = vmul.f32 %v92, %v764
    %v1597 = vmul.f32 %v93, %v765
    %v1598 = vmul.f32 %v94, %v766
    %v1599 = vmul.f32 %v95, %v767
    %v1600 = vmul.f32 %v96, %v768
    %v1601 = vmul.f32 %v97, %v769
    %v1602 = vmul.f32 %v98, %v770
    %v1603 = vmul.f32 %v99, %v771
    %v1604 = vmul.f32 %v100, %v772
    %v1605 = vmul.f32 %v101, %v773
    %v1606 = vmul.f32 %v102, %v774
    %v1607 = vmul.f32 %v103, %v775
    %v1608 = vmul.f32 %v104, %v776
    %v1609 = vmul.f32 %v105, %v777
    %v1610 = vmul.f32 %v106, %v778
    %v1611 = vmul.f32 %v107, %v779
    %v1612 = vmul.f32 %v108, %v780
    %v1613 = vmul.f32 %v109, %v781
    %v1614 = vmul.f32 %v110, %v782
    %v1615 = vmul.f32 %v111, %v783
    %v1616 = vmul.f32 %v112, %v784
    %v1617 = vmul.f32 %v113, %v785
    %v1618 = vmul.f32 %v114, %v786
    %v1619 = vmul.f32 %v115, %v787
    %v1620 = vmul.f32 %v116, %v788
    %v1621 = vmul.f32 %v117, %v789
    %v1622 = vmul.f32 %v118, %v790
    %v1623 = vmul.f32 %v119, %v791
    %v1624 = vmul.f32 %v120, %v792
    %v1625 = vmul.f32 %v121, %v793
    %v1626 = vmul.f32 %v122, %v794
    %v1627 = vadd.f32 %v1563, %v1595
    %v1628 = vadd.f32 %v1564, %v1596
    %v1629 = vadd.f32 %v1565, %v1597
    %v1630 = vadd.f32 %v1566, %v1598
    %v1631 = vadd.f32 %v1567, %v1599
    %v1632 = vadd.f32 %v1568, %v1600
    %v1633 = vadd.f32 %v1569, %v1601
    %v1634 = vadd.f32 %v1570, %v1602
    %v1635 = vadd.f32 %v1571, %v1603
    %v1636 = vadd.f32 %v1572, %v1604
    %v1637 = vadd.f32 %v1573, %v1605
    %v1638 = vadd.f32 %v1574, %v1606
    %v1639 = vadd.f32 %v1575, %v1607
    %v1640 = vadd.f32 %v1576, %v1608
    %v1641 = vadd.f32 %v1577, %v1609
    %v1642 = vadd.f32 %v1578, %v1610
    %v1643 = vadd.f32 %v1579, %v1611
    %v1644 = vadd.f32 %v1580, %v1612
    %v1645 = vadd.f32 %v1581, %v1613
    %v1646 = vadd.f32 %v1582, %v1614
    %v1647 = vadd.f32 %v1583, %v1615
    %v1648 = vadd.f32 %v1584, %v1616
    %v1649 = vadd.f32 %v1585, %v1617
    %v1650 = vadd.f32 %v1586, %v1618
    %v1651 = vadd.f32 %v1587, %v1619
    %v1652 = vadd.f32 %v1588, %v1620
    %v1653 = vadd.f32 %v1589, %v1621
    %v1654 = vadd.f32 %v1590, %v1622
    %v1655 = vadd.f32 %v1591, %v1623
    %v1656 = vadd.f32 %v1592, %v1624
    %v1657 = vadd.f32 %v1593, %v1625
    %v1658 = vadd.f32 %v1594, %v1626
    %v1659 = vmul.f32 %v731, %v123
    %v1660 = vmul.f32 %v732, %v124
    %v1661 = vmul.f32 %v733, %v125
    %v1662 = vmul.f32 %v734, %v126
    %v1663 = vmul.f32 %v735, %v127
    %v1664 = vmul.f32 %v736, %v128
    %v1665 = vmul.f32 %v737, %v129
    %v1666 = vmul.f32 %v738, %v130
    %v1667 = vmul.f32 %v739, %v131
    %v1668 = vmul.f32 %v740, %v132
    %v1669 = vmul.f32 %v741, %v133
    %v1670 = vmul.f32 %v742, %v134
    %v1671 = vmul.f32 %v743, %v135
    %v1672 = vmul.f32 %v744, %v136
    %v1673 = vmul.f32 %v745, %v137
    %v1674 = vmul.f32 %v746, %v138
    %v1675 = vmul.f32 %v747, %v139
    %v1676 = vmul.f32 %v748, %v140
    %v1677 = vmul.f32 %v749, %v141
    %v1678 = vmul.f32 %v750, %v142
    %v1679 = vmul.f32 %v751, %v143
    %v1680 = vmul.f32 %v752, %v144
    %v1681 = vmul.f32 %v753, %v145
    %v1682 = vmul.f32 %v754, %v146
    %v1683 = vmul.f32 %v755, %v147
    %v1684 = vmul.f32 %v756, %v148
    %v1685 = vmul.f32 %v757, %v149
    %v1686 = vmul.f32 %v758, %v150
    %v1687 = vmul.f32 %v759, %v151
    %v1688 = vmul.f32 %v760, %v152
    %v1689 = vmul.f32 %v761, %v153
    %v1690 = vmul.f32 %v762, %v154
    %v1691 = vsub.f32 %v1627, %v1659
    %v1692 = vsub.f32 %v1628, %v1660
    %v1693 = vsub.f32 %v1629, %v1661
    %v1694 = vsub.f32 %v1630, %v1662
    %v1695 = vsub.f32 %v1631, %v1663
    %v1696 = vsub.f32 %v1632, %v1664
    %v1697 = vsub.f32 %v1633, %v1665
    %v1698 = vsub.f32 %v1634, %v1666
    %v1699 = vsub.f32 %v1635, %v1667
    %v1700 = vsub.f32 %v1636, %v1668
    %v1701 = vsub.f32 %v1637, %v1669
    %v1702 = vsub.f32 %v1638, %v1670
    %v1703 = vsub.f32 %v1639, %v1671
    %v1704 = vsub.f32 %v1640, %v1672
    %v1705 = vsub.f32 %v1641, %v1673
    %v1706 = vsub.f32 %v1642, %v1674
    %v1707 = vsub.f32 %v1643, %v1675
    %v1708 = vsub.f32 %v1644, %v1676
    %v1709 = vsub.f32 %v1645, %v1677
    %v1710 = vsub.f32 %v1646, %v1678
    %v1711 = vsub.f32 %v1647, %v1679
    %v1712 = vsub.f32 %v1648, %v1680
    %v1713 = vsub.f32 %v1649, %v1681
    %v1714 = vsub.f32 %v1650, %v1682
    %v1715 = vsub.f32 %v1651, %v1683
    %v1716 = vsub.f32 %v1652, %v1684
    %v1717 = vsub.f32 %v1653, %v1685
    %v1718 = vsub.f32 %v1654, %v1686
    %v1719 = vsub.f32 %v1655, %v1687
    %v1720 = vsub.f32 %v1656, %v1688
    %v1721 = vsub.f32 %v1657, %v1689
    %v1722 = vsub.f32 %v1658, %v1690
    %v1723 = vmul.f32 %v1019, %v315
    %v1724 = vmul.f32 %v1020, %v316
    %v1725 = vmul.f32 %v1021, %v317
    %v1726 = vmul.f32 %v1022, %v318
    %v1727 = vmul.f32 %v1023, %v319
    %v1728 = vmul.f32 %v1024, %v320
    %v1729 = vmul.f32 %v1025, %v321
    %v1730 = vmul.f32 %v1026, %v322
    %v1731 = vmul.f32 %v1027, %v323
    %v1732 = vmul.f32 %v1028, %v324
    %v1733 = vmul.f32 %v1029, %v325
    %v1734 = vmul.f32 %v1030, %v326
    %v1735 = vmul.f32 %v1031, %v327
    %v1736 = vmul.f32 %v1032, %v328
    %v1737 = vmul.f32 %v1033, %v329
    %v1738 = vmul.f32 %v1034, %v330
    %v1739 = vmul.f32 %v1035, %v331
    %v1740 = vmul.f32 %v1036, %v332
    %v1741 = vmul.f32 %v1037, %v333
    %v1742 = vmul.f32 %v1038, %v334
    %v1743 = vmul.f32 %v1039, %v335
    %v1744 = vmul.f32 %v1040, %v336
    %v1745 = vmul.f32 %v1041, %v337
    %v1746 = vmul.f32 %v1042, %v338
    %v1747 = vmul.f32 %v1043, %v339
    %v1748 = vmul.f32 %v1044, %v340
    %v1749 = vmul.f32 %v1045, %v341
    %v1750 = vmul.f32 %v1046, %v342
    %v1751 = vmul.f32 %v1047, %v343
    %v1752 = vmul.f32 %v1048, %v344
    %v1753 = vmul.f32 %v1049, %v345
    %v1754 = vmul.f32 %v1050, %v346
    %v1755 = vmul.f32 %v1243, %v347
    %v1756 = vmul.f32 %v1244, %v348
    %v1757 = vmul.f32 %v1245, %v349
    %v1758 = vmul.f32 %v1246, %v350
    %v1759 = vmul.f32 %v1247, %v351
    %v1760 = vmul.f32 %v1248, %v352
    %v1761 = vmul.f32 %v1249, %v353
    %v1762 = vmul.f32 %v1250, %v354
    %v1763 = vmul.f32 %v1251, %v355
    %v1764 = vmul.f32 %v1252, %v356
    %v1765 = vmul.f32 %v1253, %v357
    %v1766 = vmul.f32 %v1254, %v358
    %v1767 = vmul.f32 %v1255, %v359
    %v1768 = vmul.f32 %v1256, %v360
    %v1769 = vmul.f32 %v1257, %v361
    %v1770 = vmul.f32 %v1258, %v362
    %v1771 = vmul.f32 %v1259, %v363
    %v1772 = vmul.f32 %v1260, %v364
    %v1773 = vmul.f32 %v1261, %v365
    %v1774 = vmul.f32 %v1262, %v366
    %v1775 = vmul.f32 %v1263, %v367
    %v1776 = vmul.f32 %v1264, %v368
    %v1777 = vmul.f32 %v1265, %v369
    %v1778 = vmul.f32 %v1266, %v370
    %v1779 = vmul.f32 %v1267, %v371
    %v1780 = vmul.f32 %v1268, %v372
    %v1781 = vmul.f32 %v1269, %v373
    %v1782 = vmul.f32 %v1270, %v374
    %v1783 = vmul.f32 %v1271, %v375
    %v1784 = vmul.f32 %v1272, %v376
    %v1785 = vmul.f32 %v1273, %v377
    %v1786 = vmul.f32 %v1274, %v378
    %v1787 = vadd.f32 %v1723, %v1755
    %v1788 = vadd.f32 %v1724, %v1756
    %v1789 = vadd.f32 %v1725, %v1757
    %v1790 = vadd.f32 %v1726, %v1758
    %v1791 = vadd.f32 %v1727, %v1759
    %v1792 = vadd.f32 %v1728, %v1760
    %v1793 = vadd.f32 %v1729, %v1761
    %v1794 = vadd.f32 %v1730, %v1762
    %v1795 = vadd.f32 %v1731, %v1763
    %v1796 = vadd.f32 %v1732, %v1764
    %v1797 = vadd.f32 %v1733, %v1765
    %v1798 = vadd.f32 %v1734, %v1766
    %v1799 = vadd.f32 %v1735, %v1767
    %v1800 = vadd.f32 %v1736, %v1768
    %v1801 = vadd.f32 %v1737, %v1769
    %v1802 = vadd.f32 %v1738, %v1770
    %v1803 = vadd.f32 %v1739, %v1771
    %v1804 = vadd.f32 %v1740, %v1772
    %v1805 = vadd.f32 %v1741, %v1773
    %v1806 = vadd.f32 %v1742, %v1774
    %v1807 = vadd.f32 %v1743, %v1775
    %v1808 = vadd.f32 %v1744, %v1776
    %v1809 = vadd.f32 %v1745, %v1777
    %v1810 = vadd.f32 %v1746, %v1778
    %v1811 = vadd.f32 %v1747, %v1779
    %v1812 = vadd.f32 %v1748, %v1780
    %v1813 = vadd.f32 %v1749, %v1781
    %v1814 = vadd.f32 %v1750, %v1782
    %v1815 = vadd.f32 %v1751, %v1783
    %v1816 = vadd.f32 %v1752, %v1784
    %v1817 = vadd.f32 %v1753, %v1785
    %v1818 = vadd.f32 %v1754, %v1786
    %v1819 = vmul.f32 %v1467, %v379
    %v1820 = vmul.f32 %v1468, %v380
    %v1821 = vmul.f32 %v1469, %v381
    %v1822 = vmul.f32 %v1470, %v382
    %v1823 = vmul.f32 %v1471, %v383
    %v1824 = vmul.f32 %v1472, %v384
    %v1825 = vmul.f32 %v1473, %v385
    %v1826 = vmul.f32 %v1474, %v386
    %v1827 = vmul.f32 %v1475, %v387
    %v1828 = vmul.f32 %v1476, %v388
    %v1829 = vmul.f32 %v1477, %v389
    %v1830 = vmul.f32 %v1478, %v390
    %v1831 = vmul.f32 %v1479, %v391
    %v1832 = vmul.f32 %v1480, %v392
    %v1833 = vmul.f32 %v1481, %v393
    %v1834 = vmul.f32 %v1482, %v394
    %v1835 = vmul.f32 %v1483, %v395
    %v1836 = vmul.f32 %v1484, %v396
    %v1837 = vmul.f32 %v1485, %v397
    %v1838 = vmul.f32 %v1486, %v398
    %v1839 = vmul.f32 %v1487, %v399
    %v1840 = vmul.f32 %v1488, %v400
    %v1841 = vmul.f32 %v1489, %v401
    %v1842 = vmul.f32 %v1490, %v402
    %v1843 = vmul.f32 %v1491, %v403
    %v1844 = vmul.f32 %v1492, %v404
    %v1845 = vmul.f32 %v1493, %v405
    %v1846 = vmul.f32 %v1494, %v406
    %v1847 = vmul.f32 %v1495, %v407
    %v1848 = vmul.f32 %v1496, %v408
    %v1849 = vmul.f32 %v1497, %v409
    %v1850 = vmul.f32 %v1498, %v410
    %v1851 = vadd.f32 %v1787, %v1819
    %v1852 = vadd.f32 %v1788, %v1820
    %v1853 = vadd.f32 %v1789, %v1821
    %v1854 = vadd.f32 %v1790, %v1822
    %v1855 = vadd.f32 %v1791, %v1823
    %v1856 = vadd.f32 %v1792, %v1824
    %v1857 = vadd.f32 %v1793, %v1825
    %v1858 = vadd.f32 %v1794, %v1826
    %v1859 = vadd.f32 %v1795, %v1827
    %v1860 = vadd.f32 %v1796, %v1828
    %v1861 = vadd.f32 %v1797, %v1829
    %v1862 = vadd.f32 %v1798, %v1830
    %v1863 = vadd.f32 %v1799, %v1831
    %v1864 = vadd.f32 %v1800, %v1832
    %v1865 = vadd.f32 %v1801, %v1833
    %v1866 = vadd.f32 %v1802, %v1834
    %v1867 = vadd.f32 %v1803, %v1835
    %v1868 = vadd.f32 %v1804, %v1836
    %v1869 = vadd.f32 %v1805, %v1837
    %v1870 = vadd.f32 %v1806, %v1838
    %v1871 = vadd.f32 %v1807, %v1839
    %v1872 = vadd.f32 %v1808, %v1840
    %v1873 = vadd.f32 %v1809, %v1841
    %v1874 = vadd.f32 %v1810, %v1842
    %v1875 = vadd.f32 %v1811, %v1843
    %v1876 = vadd.f32 %v1812, %v1844
    %v1877 = vadd.f32 %v1813, %v1845
    %v1878 = vadd.f32 %v1814, %v1846
    %v1879 = vadd.f32 %v1815, %v1847
    %v1880 = vadd.f32 %v1816, %v1848
    %v1881 = vadd.f32 %v1817, %v1849
    %v1882 = vadd.f32 %v1818, %v1850
    %v1883 = vmul.f32 %v1691, %v411
    %v1884 = vmul.f32 %v1692, %v412
    %v1885 = vmul.f32 %v1693, %v413
    %v1886 = vmul.f32 %v1694, %v414
    %v1887 = vmul.f32 %v1695, %v415
    %v1888 = vmul.f32 %v1696, %v416
    %v1889 = vmul.f32 %v1697, %v417
    %v1890 = vmul.f32 %v1698, %v418
    %v1891 = vmul.f32 %v1699, %v419
    %v1892 = vmul.f32 %v1700, %v420
    %v1893 = vmul.f32 %v1701, %v421
    %v1894 = vmul.f32 %v1702, %v422
    %v1895 = vmul.f32 %v1703, %v423
    %v1896 = vmul.f32 %v1704, %v424
    %v1897 = vmul.f32 %v1705, %v425
    %v1898 = vmul.f32 %v1706, %v426
    %v1899 = vmul.f32 %v1707, %v427
    %v1900 = vmul.f32 %v1708, %v428
    %v1901 = vmul.f32 %v1709, %v429
    %v1902 = vmul.f32 %v1710, %v430
    %v1903 = vmul.f32 %v1711, %v431
    %v1904 = vmul.f32 %v1712, %v432
    %v1905 = vmul.f32 %v1713, %v433
    %v1906 = vmul.f32 %v1714, %v434
    %v1907 = vmul.f32 %v1715, %v435
    %v1908 = vmul.f32 %v1716, %v436
    %v1909 = vmul.f32 %v1717, %v437
    %v1910 = vmul.f32 %v1718, %v438
    %v1911 = vmul.f32 %v1719, %v439
    %v1912 = vmul.f32 %v1720, %v440
    %v1913 = vmul.f32 %v1721, %v441
    %v1914 = vmul.f32 %v1722, %v442
    %v1915 = vadd.f32 %v1851, %v1883
    %v1916 = vadd.f32 %v1852, %v1884
    %v1917 = vadd.f32 %v1853, %v1885
    %v1918 = vadd.f32 %v1854, %v1886
    %v1919 = vadd.f32 %v1855, %v1887
    %v1920 = vadd.f32 %v1856, %v1888
    %v1921 = vadd.f32 %v1857, %v1889
    %v1922 = vadd.f32 %v1858, %v1890
    %v1923 = vadd.f32 %v1859, %v1891
    %v1924 = vadd.f32 %v1860, %v1892
    %v1925 = vadd.f32 %v1861, %v1893
    %v1926 = vadd.f32 %v1862, %v1894
    %v1927 = vadd.f32 %v1863, %v1895
    %v1928 = vadd.f32 %v1864, %v1896
    %v1929 = vadd.f32 %v1865, %v1897
    %v1930 = vadd.f32 %v1866, %v1898
    %v1931 = vadd.f32 %v1867, %v1899
    %v1932 = vadd.f32 %v1868, %v1900
    %v1933 = vadd.f32 %v1869, %v1901
    %v1934 = vadd.f32 %v1870, %v1902
    %v1935 = vadd.f32 %v1871, %v1903
    %v1936 = vadd.f32 %v1872, %v1904
    %v1937 = vadd.f32 %v1873, %v1905
    %v1938 = vadd.f32 %v1874, %v1906
    %v1939 = vadd.f32 %v1875, %v1907
    %v1940 = vadd.f32 %v1876, %v1908
    %v1941 = vadd.f32 %v1877, %v1909
    %v1942 = vadd.f32 %v1878, %v1910
    %v1943 = vadd.f32 %v1879, %v1911
    %v1944 = vadd.f32 %v1880, %v1912
    %v1945 = vadd.f32 %v1881, %v1913
    %v1946 = vadd.f32 %v1882, %v1914
    %1947 = vmatprep.subr.mxu0 0.0
    %1948 = vmatpush1.xpose.msra.mxu0 %v1930
    %1949 = vmatprep.subr.mxu0 0.0
    %1950 = vmatpush1.xpose.msra.mxu0 %v1929
    %1951 = vmatprep.subr.mxu0 0.0
    %1952 = vmatpush1.xpose.msra.mxu0 %v1928
    %1953 = vmatprep.subr.mxu0 0.0
    %1954 = vmatpush1.xpose.msra.mxu0 %v1927
    %1955 = vmatprep.subr.mxu0 0.0
    %1956 = vmatpush1.xpose.msra.mxu0 %v1926
    %1957 = vmatprep.subr.mxu0 0.0
    %1958 = vmatpush1.xpose.msra.mxu0 %v1925
    %1959 = vmatprep.subr.mxu0 0.0
    %1960 = vmatpush1.xpose.msra.mxu0 %v1924
    %1961 = vmatprep.subr.mxu0 0.0
    %1962 = vmatpush1.xpose.msra.mxu0 %v1923
    %1963 = vmatprep.subr.mxu0 0.0
    %1964 = vmatpush1.xpose.msra.mxu0 %v1922
    %1965 = vmatprep.subr.mxu0 0.0
    %1966 = vmatpush1.xpose.msra.mxu0 %v1921
    %1967 = vmatprep.subr.mxu0 0.0
    %1968 = vmatpush1.xpose.msra.mxu0 %v1920
    %1969 = vmatprep.subr.mxu0 0.0
    %1970 = vmatpush1.xpose.msra.mxu0 %v1919
    %1971 = vmatprep.subr.mxu0 0.0
    %1972 = vmatpush1.xpose.msra.mxu0 %v1918
    %1973 = vmatprep.subr.mxu0 0.0
    %1974 = vmatpush1.xpose.msra.mxu0 %v1917
    %1975 = vmatprep.subr.mxu0 0.0
    %1976 = vmatpush1.xpose.msra.mxu0 %v1916
    %1977 = vmatprep.subr.mxu0 0.0
    %1978 = vmatpush1.xpose.msra.mxu0 %v1915
    %1979 = vmatprep.subr.mxu0 0.0
    %1980 = vmatpush2.xpose.msra.mxu0 %v1946
    %1981 = vmatprep.subr.mxu0 0.0
    %1982 = vmatpush2.xpose.msra.mxu0 %v1945
    %1983 = vmatprep.subr.mxu0 0.0
    %1984 = vmatpush2.xpose.msra.mxu0 %v1944
    %1985 = vmatprep.subr.mxu0 0.0
    %1986 = vmatpush2.xpose.msra.mxu0 %v1943
    %1987 = vmatprep.subr.mxu0 0.0
    %1988 = vmatpush2.xpose.msra.mxu0 %v1942
    %1989 = vmatprep.subr.mxu0 0.0
    %1990 = vmatpush2.xpose.msra.mxu0 %v1941
    %1991 = vmatprep.subr.mxu0 0.0
    %1992 = vmatpush2.xpose.msra.mxu0 %v1940
    %1993 = vmatprep.subr.mxu0 0.0
    %1994 = vmatpush2.xpose.msra.mxu0 %v1939
    %1995 = vmatprep.subr.mxu0 0.0
    %1996 = vmatpush2.xpose.msra.mxu0 %v1938
    %1997 = vmatprep.subr.mxu0 0.0
    %1998 = vmatpush2.xpose.msra.mxu0 %v1937
    %1999 = vmatprep.subr.mxu0 0.0
    %2000 = vmatpush2.xpose.msra.mxu0 %v1936
    %2001 = vmatprep.subr.mxu0 0.0
    %2002 = vmatpush2.xpose.msra.mxu0 %v1935
    %2003 = vmatprep.subr.mxu0 0.0
    %2004 = vmatpush2.xpose.msra.mxu0 %v1934
    %2005 = vmatprep.subr.mxu0 0.0
    %2006 = vmatpush2.xpose.msra.mxu0 %v1933
    %2007 = vmatprep.subr.mxu0 0.0
    %2008 = vmatpush2.xpose.msra.mxu0 %v1932
    %2009 = vmatprep.subr.mxu0 0.0
    %2010 = vmatpush2.xpose.msra.mxu0 %v1931
    %2011 = vmatprep.mubr.f32.mxu0 0.0
    %2012 = vmatmul.mubr.f32.gmra.mxu0 1.0
    %v2013 = vpop.f32.mrf.mxu0
    %v2014 = vadd.f32 0.0, %v2013
    %v2015 = vpop.f32.mrf.mxu0
    %v2016 = vadd.f32 0.0, %v2015
    %2017 = vdwg.mxu0
    %v2020 = vcombine.low %v2014, %v2016
    %v2022 = vunpack.c.l.s4 1966171168
    %v2023 = vunpack.c.0.s8 %v2022
    %v2024 = vlaneseq
    %v2025 = vshrl.u32 %v2024, 7
    %v2026 = vsub.s32 %v2023, %v2025
    %v2027 = vrot.slane %v2020, %v2026
    %v2029 = vunpack.c.l.s4 1966171168
    %v2030 = vunpack.c.0.s8 %v2029
    %v2031 = vlaneseq
    %v2032 = vshrl.u32 %v2031, 7
    %v2033 = vsub.s32 %v2030, %v2032
    %v2034 = vrot.slane %v2027, %v2033
    %v2036 = vlaneseq
    %vm2037 = vcmp.ge.s32.totalorder %v2036, 0
    %vm2038 = vcmp.lt.s32.totalorder %v2036, 256
    %vm2039 = vmand %vm2037, %vm2038
    %2040 = vst.msk [vmem:[#allocation8] sm:$0x3] %vm2039, %v2034
    %v2041 = vmul.f32 %v187, %v187
    %v2042 = vmul.f32 %v188, %v188
    %v2043 = vmul.f32 %v189, %v189
    %v2044 = vmul.f32 %v190, %v190
    %v2045 = vmul.f32 %v191, %v191
    %v2046 = vmul.f32 %v192, %v192
    %v2047 = vmul.f32 %v193, %v193
    %v2048 = vmul.f32 %v194, %v194
    %v2049 = vmul.f32 %v195, %v195
    %v2050 = vmul.f32 %v196, %v196
    %v2051 = vmul.f32 %v197, %v197
    %v2052 = vmul.f32 %v198, %v198
    %v2053 = vmul.f32 %v199, %v199
    %v2054 = vmul.f32 %v200, %v200
    %v2055 = vmul.f32 %v201, %v201
    %v2056 = vmul.f32 %v202, %v202
    %v2057 = vmul.f32 %v203, %v203
    %v2058 = vmul.f32 %v204, %v204
    %v2059 = vmul.f32 %v205, %v205
    %v2060 = vmul.f32 %v206, %v206
    %v2061 = vmul.f32 %v207, %v207
    %v2062 = vmul.f32 %v208, %v208
    %v2063 = vmul.f32 %v209, %v209
    %v2064 = vmul.f32 %v210, %v210
    %v2065 = vmul.f32 %v211, %v211
    %v2066 = vmul.f32 %v212, %v212
    %v2067 = vmul.f32 %v213, %v213
    %v2068 = vmul.f32 %v214, %v214
    %v2069 = vmul.f32 %v215, %v215
    %v2070 = vmul.f32 %v216, %v216
    %v2071 = vmul.f32 %v217, %v217
    %v2072 = vmul.f32 %v218, %v218
    %v2073 = vmul.f32 %v219, %v219
    %v2074 = vmul.f32 %v220, %v220
    %v2075 = vmul.f32 %v221, %v221
    %v2076 = vmul.f32 %v222, %v222
    %v2077 = vmul.f32 %v223, %v223
    %v2078 = vmul.f32 %v224, %v224
    %v2079 = vmul.f32 %v225, %v225
    %v2080 = vmul.f32 %v226, %v226
    %v2081 = vmul.f32 %v227, %v227
    %v2082 = vmul.f32 %v228, %v228
    %v2083 = vmul.f32 %v229, %v229
    %v2084 = vmul.f32 %v230, %v230
    %v2085 = vmul.f32 %v231, %v231
    %v2086 = vmul.f32 %v232, %v232
    %v2087 = vmul.f32 %v233, %v233
    %v2088 = vmul.f32 %v234, %v234
    %v2089 = vmul.f32 %v235, %v235
    %v2090 = vmul.f32 %v236, %v236
    %v2091 = vmul.f32 %v237, %v237
    %v2092 = vmul.f32 %v238, %v238
    %v2093 = vmul.f32 %v239, %v239
    %v2094 = vmul.f32 %v240, %v240
    %v2095 = vmul.f32 %v241, %v241
    %v2096 = vmul.f32 %v242, %v242
    %v2097 = vmul.f32 %v243, %v243
    %v2098 = vmul.f32 %v244, %v244
    %v2099 = vmul.f32 %v245, %v245
    %v2100 = vmul.f32 %v246, %v246
    %v2101 = vmul.f32 %v247, %v247
    %v2102 = vmul.f32 %v248, %v248
    %v2103 = vmul.f32 %v249, %v249
    %v2104 = vmul.f32 %v250, %v250
    %v2105 = vadd.f32 %v2041, %v2073
    %v2106 = vadd.f32 %v2042, %v2074
    %v2107 = vadd.f32 %v2043, %v2075
    %v2108 = vadd.f32 %v2044, %v2076
    %v2109 = vadd.f32 %v2045, %v2077
    %v2110 = vadd.f32 %v2046, %v2078
    %v2111 = vadd.f32 %v2047, %v2079
    %v2112 = vadd.f32 %v2048, %v2080
    %v2113 = vadd.f32 %v2049, %v2081
    %v2114 = vadd.f32 %v2050, %v2082
    %v2115 = vadd.f32 %v2051, %v2083
    %v2116 = vadd.f32 %v2052, %v2084
    %v2117 = vadd.f32 %v2053, %v2085
    %v2118 = vadd.f32 %v2054, %v2086
    %v2119 = vadd.f32 %v2055, %v2087
    %v2120 = vadd.f32 %v2056, %v2088
    %v2121 = vadd.f32 %v2057, %v2089
    %v2122 = vadd.f32 %v2058, %v2090
    %v2123 = vadd.f32 %v2059, %v2091
    %v2124 = vadd.f32 %v2060, %v2092
    %v2125 = vadd.f32 %v2061, %v2093
    %v2126 = vadd.f32 %v2062, %v2094
    %v2127 = vadd.f32 %v2063, %v2095
    %v2128 = vadd.f32 %v2064, %v2096
    %v2129 = vadd.f32 %v2065, %v2097
    %v2130 = vadd.f32 %v2066, %v2098
    %v2131 = vadd.f32 %v2067, %v2099
    %v2132 = vadd.f32 %v2068, %v2100
    %v2133 = vadd.f32 %v2069, %v2101
    %v2134 = vadd.f32 %v2070, %v2102
    %v2135 = vadd.f32 %v2071, %v2103
    %v2136 = vadd.f32 %v2072, %v2104
    %v2137 = vmul.f32 %v251, %v251
    %v2138 = vmul.f32 %v252, %v252
    %v2139 = vmul.f32 %v253, %v253
    %v2140 = vmul.f32 %v254, %v254
    %v2141 = vmul.f32 %v255, %v255
    %v2142 = vmul.f32 %v256, %v256
    %v2143 = vmul.f32 %v257, %v257
    %v2144 = vmul.f32 %v258, %v258
    %v2145 = vmul.f32 %v259, %v259
    %v2146 = vmul.f32 %v260, %v260
    %v2147 = vmul.f32 %v261, %v261
    %v2148 = vmul.f32 %v262, %v262
    %v2149 = vmul.f32 %v263, %v263
    %v2150 = vmul.f32 %v264, %v264
    %v2151 = vmul.f32 %v265, %v265
    %v2152 = vmul.f32 %v266, %v266
    %v2153 = vmul.f32 %v267, %v267
    %v2154 = vmul.f32 %v268, %v268
    %v2155 = vmul.f32 %v269, %v269
    %v2156 = vmul.f32 %v270, %v270
    %v2157 = vmul.f32 %v271, %v271
    %v2158 = vmul.f32 %v272, %v272
    %v2159 = vmul.f32 %v273, %v273
    %v2160 = vmul.f32 %v274, %v274
    %v2161 = vmul.f32 %v275, %v275
    %v2162 = vmul.f32 %v276, %v276
    %v2163 = vmul.f32 %v277, %v277
    %v2164 = vmul.f32 %v278, %v278
    %v2165 = vmul.f32 %v279, %v279
    %v2166 = vmul.f32 %v280, %v280
    %v2167 = vmul.f32 %v281, %v281
    %v2168 = vmul.f32 %v282, %v282
    %v2169 = vadd.f32 %v2105, %v2137
    %v2170 = vadd.f32 %v2106, %v2138
    %v2171 = vadd.f32 %v2107, %v2139
    %v2172 = vadd.f32 %v2108, %v2140
    %v2173 = vadd.f32 %v2109, %v2141
    %v2174 = vadd.f32 %v2110, %v2142
    %v2175 = vadd.f32 %v2111, %v2143
    %v2176 = vadd.f32 %v2112, %v2144
    %v2177 = vadd.f32 %v2113, %v2145
    %v2178 = vadd.f32 %v2114, %v2146
    %v2179 = vadd.f32 %v2115, %v2147
    %v2180 = vadd.f32 %v2116, %v2148
    %v2181 = vadd.f32 %v2117, %v2149
    %v2182 = vadd.f32 %v2118, %v2150
    %v2183 = vadd.f32 %v2119, %v2151
    %v2184 = vadd.f32 %v2120, %v2152
    %v2185 = vadd.f32 %v2121, %v2153
    %v2186 = vadd.f32 %v2122, %v2154
    %v2187 = vadd.f32 %v2123, %v2155
    %v2188 = vadd.f32 %v2124, %v2156
    %v2189 = vadd.f32 %v2125, %v2157
    %v2190 = vadd.f32 %v2126, %v2158
    %v2191 = vadd.f32 %v2127, %v2159
    %v2192 = vadd.f32 %v2128, %v2160
    %v2193 = vadd.f32 %v2129, %v2161
    %v2194 = vadd.f32 %v2130, %v2162
    %v2195 = vadd.f32 %v2131, %v2163
    %v2196 = vadd.f32 %v2132, %v2164
    %v2197 = vadd.f32 %v2133, %v2165
    %v2198 = vadd.f32 %v2134, %v2166
    %v2199 = vadd.f32 %v2135, %v2167
    %v2200 = vadd.f32 %v2136, %v2168
    %v2201 = vmul.f32 %v283, %v283
    %v2202 = vmul.f32 %v284, %v284
    %v2203 = vmul.f32 %v285, %v285
    %v2204 = vmul.f32 %v286, %v286
    %v2205 = vmul.f32 %v287, %v287
    %v2206 = vmul.f32 %v288, %v288
    %v2207 = vmul.f32 %v289, %v289
    %v2208 = vmul.f32 %v290, %v290
    %v2209 = vmul.f32 %v291, %v291
    %v2210 = vmul.f32 %v292, %v292
    %v2211 = vmul.f32 %v293, %v293
    %v2212 = vmul.f32 %v294, %v294
    %v2213 = vmul.f32 %v295, %v295
    %v2214 = vmul.f32 %v296, %v296
    %v2215 = vmul.f32 %v297, %v297
    %v2216 = vmul.f32 %v298, %v298
    %v2217 = vmul.f32 %v299, %v299
    %v2218 = vmul.f32 %v300, %v300
    %v2219 = vmul.f32 %v301, %v301
    %v2220 = vmul.f32 %v302, %v302
    %v2221 = vmul.f32 %v303, %v303
    %v2222 = vmul.f32 %v304, %v304
    %v2223 = vmul.f32 %v305, %v305
    %v2224 = vmul.f32 %v306, %v306
    %v2225 = vmul.f32 %v307, %v307
    %v2226 = vmul.f32 %v308, %v308
    %v2227 = vmul.f32 %v309, %v309
    %v2228 = vmul.f32 %v310, %v310
    %v2229 = vmul.f32 %v311, %v311
    %v2230 = vmul.f32 %v312, %v312
    %v2231 = vmul.f32 %v313, %v313
    %v2232 = vmul.f32 %v314, %v314
    %v2233 = vadd.f32 %v2169, %v2201
    %v2234 = vadd.f32 %v2170, %v2202
    %v2235 = vadd.f32 %v2171, %v2203
    %v2236 = vadd.f32 %v2172, %v2204
    %v2237 = vadd.f32 %v2173, %v2205
    %v2238 = vadd.f32 %v2174, %v2206
    %v2239 = vadd.f32 %v2175, %v2207
    %v2240 = vadd.f32 %v2176, %v2208
    %v2241 = vadd.f32 %v2177, %v2209
    %v2242 = vadd.f32 %v2178, %v2210
    %v2243 = vadd.f32 %v2179, %v2211
    %v2244 = vadd.f32 %v2180, %v2212
    %v2245 = vadd.f32 %v2181, %v2213
    %v2246 = vadd.f32 %v2182, %v2214
    %v2247 = vadd.f32 %v2183, %v2215
    %v2248 = vadd.f32 %v2184, %v2216
    %v2249 = vadd.f32 %v2185, %v2217
    %v2250 = vadd.f32 %v2186, %v2218
    %v2251 = vadd.f32 %v2187, %v2219
    %v2252 = vadd.f32 %v2188, %v2220
    %v2253 = vadd.f32 %v2189, %v2221
    %v2254 = vadd.f32 %v2190, %v2222
    %v2255 = vadd.f32 %v2191, %v2223
    %v2256 = vadd.f32 %v2192, %v2224
    %v2257 = vadd.f32 %v2193, %v2225
    %v2258 = vadd.f32 %v2194, %v2226
    %v2259 = vadd.f32 %v2195, %v2227
    %v2260 = vadd.f32 %v2196, %v2228
    %v2261 = vadd.f32 %v2197, %v2229
    %v2262 = vadd.f32 %v2198, %v2230
    %v2263 = vadd.f32 %v2199, %v2231
    %v2264 = vadd.f32 %v2200, %v2232
    %v2265 = vadd.f32 %v635, %v2233
    %v2266 = vadd.f32 %v636, %v2234
    %v2267 = vadd.f32 %v637, %v2235
    %v2268 = vadd.f32 %v638, %v2236
    %v2269 = vadd.f32 %v639, %v2237
    %v2270 = vadd.f32 %v640, %v2238
    %v2271 = vadd.f32 %v641, %v2239
    %v2272 = vadd.f32 %v642, %v2240
    %v2273 = vadd.f32 %v643, %v2241
    %v2274 = vadd.f32 %v644, %v2242
    %v2275 = vadd.f32 %v645, %v2243
    %v2276 = vadd.f32 %v646, %v2244
    %v2277 = vadd.f32 %v647, %v2245
    %v2278 = vadd.f32 %v648, %v2246
    %v2279 = vadd.f32 %v649, %v2247
    %v2280 = vadd.f32 %v650, %v2248
    %v2281 = vadd.f32 %v651, %v2249
    %v2282 = vadd.f32 %v652, %v2250
    %v2283 = vadd.f32 %v653, %v2251
    %v2284 = vadd.f32 %v654, %v2252
    %v2285 = vadd.f32 %v655, %v2253
    %v2286 = vadd.f32 %v656, %v2254
    %v2287 = vadd.f32 %v657, %v2255
    %v2288 = vadd.f32 %v658, %v2256
    %v2289 = vadd.f32 %v659, %v2257
    %v2290 = vadd.f32 %v660, %v2258
    %v2291 = vadd.f32 %v661, %v2259
    %v2292 = vadd.f32 %v662, %v2260
    %v2293 = vadd.f32 %v663, %v2261
    %v2294 = vadd.f32 %v664, %v2262
    %v2295 = vadd.f32 %v665, %v2263
    %v2296 = vadd.f32 %v666, %v2264
    %v2297 = vmul.f32 %v315, %v315
    %v2298 = vmul.f32 %v316, %v316
    %v2299 = vmul.f32 %v317, %v317
    %v2300 = vmul.f32 %v318, %v318
    %v2301 = vmul.f32 %v319, %v319
    %v2302 = vmul.f32 %v320, %v320
    %v2303 = vmul.f32 %v321, %v321
    %v2304 = vmul.f32 %v322, %v322
    %v2305 = vmul.f32 %v323, %v323
    %v2306 = vmul.f32 %v324, %v324
    %v2307 = vmul.f32 %v325, %v325
    %v2308 = vmul.f32 %v326, %v326
    %v2309 = vmul.f32 %v327, %v327
    %v2310 = vmul.f32 %v328, %v328
    %v2311 = vmul.f32 %v329, %v329
    %v2312 = vmul.f32 %v330, %v330
    %v2313 = vmul.f32 %v331, %v331
    %v2314 = vmul.f32 %v332, %v332
    %v2315 = vmul.f32 %v333, %v333
    %v2316 = vmul.f32 %v334, %v334
    %v2317 = vmul.f32 %v335, %v335
    %v2318 = vmul.f32 %v336, %v336
    %v2319 = vmul.f32 %v337, %v337
    %v2320 = vmul.f32 %v338, %v338
    %v2321 = vmul.f32 %v339, %v339
    %v2322 = vmul.f32 %v340, %v340
    %v2323 = vmul.f32 %v341, %v341
    %v2324 = vmul.f32 %v342, %v342
    %v2325 = vmul.f32 %v343, %v343
    %v2326 = vmul.f32 %v344, %v344
    %v2327 = vmul.f32 %v345, %v345
    %v2328 = vmul.f32 %v346, %v346
    %v2329 = vmul.f32 %v347, %v347
    %v2330 = vmul.f32 %v348, %v348
    %v2331 = vmul.f32 %v349, %v349
    %v2332 = vmul.f32 %v350, %v350
    %v2333 = vmul.f32 %v351, %v351
    %v2334 = vmul.f32 %v352, %v352
    %v2335 = vmul.f32 %v353, %v353
    %v2336 = vmul.f32 %v354, %v354
    %v2337 = vmul.f32 %v355, %v355
    %v2338 = vmul.f32 %v356, %v356
    %v2339 = vmul.f32 %v357, %v357
    %v2340 = vmul.f32 %v358, %v358
    %v2341 = vmul.f32 %v359, %v359
    %v2342 = vmul.f32 %v360, %v360
    %v2343 = vmul.f32 %v361, %v361
    %v2344 = vmul.f32 %v362, %v362
    %v2345 = vmul.f32 %v363, %v363
    %v2346 = vmul.f32 %v364, %v364
    %v2347 = vmul.f32 %v365, %v365
    %v2348 = vmul.f32 %v366, %v366
    %v2349 = vmul.f32 %v367, %v367
    %v2350 = vmul.f32 %v368, %v368
    %v2351 = vmul.f32 %v369, %v369
    %v2352 = vmul.f32 %v370, %v370
    %v2353 = vmul.f32 %v371, %v371
    %v2354 = vmul.f32 %v372, %v372
    %v2355 = vmul.f32 %v373, %v373
    %v2356 = vmul.f32 %v374, %v374
    %v2357 = vmul.f32 %v375, %v375
    %v2358 = vmul.f32 %v376, %v376
    %v2359 = vmul.f32 %v377, %v377
    %v2360 = vmul.f32 %v378, %v378
    %v2361 = vadd.f32 %v2297, %v2329
    %v2362 = vadd.f32 %v2298, %v2330
    %v2363 = vadd.f32 %v2299, %v2331
    %v2364 = vadd.f32 %v2300, %v2332
    %v2365 = vadd.f32 %v2301, %v2333
    %v2366 = vadd.f32 %v2302, %v2334
    %v2367 = vadd.f32 %v2303, %v2335
    %v2368 = vadd.f32 %v2304, %v2336
    %v2369 = vadd.f32 %v2305, %v2337
    %v2370 = vadd.f32 %v2306, %v2338
    %v2371 = vadd.f32 %v2307, %v2339
    %v2372 = vadd.f32 %v2308, %v2340
    %v2373 = vadd.f32 %v2309, %v2341
    %v2374 = vadd.f32 %v2310, %v2342
    %v2375 = vadd.f32 %v2311, %v2343
    %v2376 = vadd.f32 %v2312, %v2344
    %v2377 = vadd.f32 %v2313, %v2345
    %v2378 = vadd.f32 %v2314, %v2346
    %v2379 = vadd.f32 %v2315, %v2347
    %v2380 = vadd.f32 %v2316, %v2348
    %v2381 = vadd.f32 %v2317, %v2349
    %v2382 = vadd.f32 %v2318, %v2350
    %v2383 = vadd.f32 %v2319, %v2351
    %v2384 = vadd.f32 %v2320, %v2352
    %v2385 = vadd.f32 %v2321, %v2353
    %v2386 = vadd.f32 %v2322, %v2354
    %v2387 = vadd.f32 %v2323, %v2355
    %v2388 = vadd.f32 %v2324, %v2356
    %v2389 = vadd.f32 %v2325, %v2357
    %v2390 = vadd.f32 %v2326, %v2358
    %v2391 = vadd.f32 %v2327, %v2359
    %v2392 = vadd.f32 %v2328, %v2360
    %v2393 = vmul.f32 %v379, %v379
    %v2394 = vmul.f32 %v380, %v380
    %v2395 = vmul.f32 %v381, %v381
    %v2396 = vmul.f32 %v382, %v382
    %v2397 = vmul.f32 %v383, %v383
    %v2398 = vmul.f32 %v384, %v384
    %v2399 = vmul.f32 %v385, %v385
    %v2400 = vmul.f32 %v386, %v386
    %v2401 = vmul.f32 %v387, %v387
    %v2402 = vmul.f32 %v388, %v388
    %v2403 = vmul.f32 %v389, %v389
    %v2404 = vmul.f32 %v390, %v390
    %v2405 = vmul.f32 %v391, %v391
    %v2406 = vmul.f32 %v392, %v392
    %v2407 = vmul.f32 %v393, %v393
    %v2408 = vmul.f32 %v394, %v394
    %v2409 = vmul.f32 %v395, %v395
    %v2410 = vmul.f32 %v396, %v396
    %v2411 = vmul.f32 %v397, %v397
    %v2412 = vmul.f32 %v398, %v398
    %v2413 = vmul.f32 %v399, %v399
    %v2414 = vmul.f32 %v400, %v400
    %v2415 = vmul.f32 %v401, %v401
    %v2416 = vmul.f32 %v402, %v402
    %v2417 = vmul.f32 %v403, %v403
    %v2418 = vmul.f32 %v404, %v404
    %v2419 = vmul.f32 %v405, %v405
    %v2420 = vmul.f32 %v406, %v406
    %v2421 = vmul.f32 %v407, %v407
    %v2422 = vmul.f32 %v408, %v408
    %v2423 = vmul.f32 %v409, %v409
    %v2424 = vmul.f32 %v410, %v410
    %v2425 = vadd.f32 %v2361, %v2393
    %v2426 = vadd.f32 %v2362, %v2394
    %v2427 = vadd.f32 %v2363, %v2395
    %v2428 = vadd.f32 %v2364, %v2396
    %v2429 = vadd.f32 %v2365, %v2397
    %v2430 = vadd.f32 %v2366, %v2398
    %v2431 = vadd.f32 %v2367, %v2399
    %v2432 = vadd.f32 %v2368, %v2400
    %v2433 = vadd.f32 %v2369, %v2401
    %v2434 = vadd.f32 %v2370, %v2402
    %v2435 = vadd.f32 %v2371, %v2403
    %v2436 = vadd.f32 %v2372, %v2404
    %v2437 = vadd.f32 %v2373, %v2405
    %v2438 = vadd.f32 %v2374, %v2406
    %v2439 = vadd.f32 %v2375, %v2407
    %v2440 = vadd.f32 %v2376, %v2408
    %v2441 = vadd.f32 %v2377, %v2409
    %v2442 = vadd.f32 %v2378, %v2410
    %v2443 = vadd.f32 %v2379, %v2411
    %v2444 = vadd.f32 %v2380, %v2412
    %v2445 = vadd.f32 %v2381, %v2413
    %v2446 = vadd.f32 %v2382, %v2414
    %v2447 = vadd.f32 %v2383, %v2415
    %v2448 = vadd.f32 %v2384, %v2416
    %v2449 = vadd.f32 %v2385, %v2417
    %v2450 = vadd.f32 %v2386, %v2418
    %v2451 = vadd.f32 %v2387, %v2419
    %v2452 = vadd.f32 %v2388, %v2420
    %v2453 = vadd.f32 %v2389, %v2421
    %v2454 = vadd.f32 %v2390, %v2422
    %v2455 = vadd.f32 %v2391, %v2423
    %v2456 = vadd.f32 %v2392, %v2424
    %v2457 = vmul.f32 %v411, %v411
    %v2458 = vmul.f32 %v412, %v412
    %v2459 = vmul.f32 %v413, %v413
    %v2460 = vmul.f32 %v414, %v414
    %v2461 = vmul.f32 %v415, %v415
    %v2462 = vmul.f32 %v416, %v416
    %v2463 = vmul.f32 %v417, %v417
    %v2464 = vmul.f32 %v418, %v418
    %v2465 = vmul.f32 %v419, %v419
    %v2466 = vmul.f32 %v420, %v420
    %v2467 = vmul.f32 %v421, %v421
    %v2468 = vmul.f32 %v422, %v422
    %v2469 = vmul.f32 %v423, %v423
    %v2470 = vmul.f32 %v424, %v424
    %v2471 = vmul.f32 %v425, %v425
    %v2472 = vmul.f32 %v426, %v426
    %v2473 = vmul.f32 %v427, %v427
    %v2474 = vmul.f32 %v428, %v428
    %v2475 = vmul.f32 %v429, %v429
    %v2476 = vmul.f32 %v430, %v430
    %v2477 = vmul.f32 %v431, %v431
    %v2478 = vmul.f32 %v432, %v432
    %v2479 = vmul.f32 %v433, %v433
    %v2480 = vmul.f32 %v434, %v434
    %v2481 = vmul.f32 %v435, %v435
    %v2482 = vmul.f32 %v436, %v436
    %v2483 = vmul.f32 %v437, %v437
    %v2484 = vmul.f32 %v438, %v438
    %v2485 = vmul.f32 %v439, %v439
    %v2486 = vmul.f32 %v440, %v440
    %v2487 = vmul.f32 %v441, %v441
    %v2488 = vmul.f32 %v442, %v442
    %v2489 = vadd.f32 %v2425, %v2457
    %v2490 = vadd.f32 %v2426, %v2458
    %v2491 = vadd.f32 %v2427, %v2459
    %v2492 = vadd.f32 %v2428, %v2460
    %v2493 = vadd.f32 %v2429, %v2461
    %v2494 = vadd.f32 %v2430, %v2462
    %v2495 = vadd.f32 %v2431, %v2463
    %v2496 = vadd.f32 %v2432, %v2464
    %v2497 = vadd.f32 %v2433, %v2465
    %v2498 = vadd.f32 %v2434, %v2466
    %v2499 = vadd.f32 %v2435, %v2467
    %v2500 = vadd.f32 %v2436, %v2468
    %v2501 = vadd.f32 %v2437, %v2469
    %v2502 = vadd.f32 %v2438, %v2470
    %v2503 = vadd.f32 %v2439, %v2471
    %v2504 = vadd.f32 %v2440, %v2472
    %v2505 = vadd.f32 %v2441, %v2473
    %v2506 = vadd.f32 %v2442, %v2474
    %v2507 = vadd.f32 %v2443, %v2475
    %v2508 = vadd.f32 %v2444, %v2476
    %v2509 = vadd.f32 %v2445, %v2477
    %v2510 = vadd.f32 %v2446, %v2478
    %v2511 = vadd.f32 %v2447, %v2479
    %v2512 = vadd.f32 %v2448, %v2480
    %v2513 = vadd.f32 %v2449, %v2481
    %v2514 = vadd.f32 %v2450, %v2482
    %v2515 = vadd.f32 %v2451, %v2483
    %v2516 = vadd.f32 %v2452, %v2484
    %v2517 = vadd.f32 %v2453, %v2485
    %v2518 = vadd.f32 %v2454, %v2486
    %v2519 = vadd.f32 %v2455, %v2487
    %v2520 = vadd.f32 %v2456, %v2488
    %v2521 = vadd.f32 %v2265, %v2489
    %v2522 = vadd.f32 %v2266, %v2490
    %v2523 = vadd.f32 %v2267, %v2491
    %v2524 = vadd.f32 %v2268, %v2492
    %v2525 = vadd.f32 %v2269, %v2493
    %v2526 = vadd.f32 %v2270, %v2494
    %v2527 = vadd.f32 %v2271, %v2495
    %v2528 = vadd.f32 %v2272, %v2496
    %v2529 = vadd.f32 %v2273, %v2497
    %v2530 = vadd.f32 %v2274, %v2498
    %v2531 = vadd.f32 %v2275, %v2499
    %v2532 = vadd.f32 %v2276, %v2500
    %v2533 = vadd.f32 %v2277, %v2501
    %v2534 = vadd.f32 %v2278, %v2502
    %v2535 = vadd.f32 %v2279, %v2503
    %v2536 = vadd.f32 %v2280, %v2504
    %v2537 = vadd.f32 %v2281, %v2505
    %v2538 = vadd.f32 %v2282, %v2506
    %v2539 = vadd.f32 %v2283, %v2507
    %v2540 = vadd.f32 %v2284, %v2508
    %v2541 = vadd.f32 %v2285, %v2509
    %v2542 = vadd.f32 %v2286, %v2510
    %v2543 = vadd.f32 %v2287, %v2511
    %v2544 = vadd.f32 %v2288, %v2512
    %v2545 = vadd.f32 %v2289, %v2513
    %v2546 = vadd.f32 %v2290, %v2514
    %v2547 = vadd.f32 %v2291, %v2515
    %v2548 = vadd.f32 %v2292, %v2516
    %v2549 = vadd.f32 %v2293, %v2517
    %v2550 = vadd.f32 %v2294, %v2518
    %v2551 = vadd.f32 %v2295, %v2519
    %v2552 = vadd.f32 %v2296, %v2520
    %v2553 = vlaneseq
    %v2554 = vshrl.u32 %v2553, 7
    %v2555 = vadd.s32 %v2554, 8
    %v2556 = vadd.s32 %v2554, 16
    %v2557 = vadd.s32 %v2554, 24
    %v2558 = vadd.s32 %v2554, 32
    %v2559 = vadd.s32 %v2554, 40
    %v2560 = vadd.s32 %v2554, 48
    %v2561 = vadd.s32 %v2554, 56
    %v2562 = vadd.s32 %v2554, 64
    %v2563 = vadd.s32 %v2554, 72
    %v2564 = vadd.s32 %v2554, 80
    %v2565 = vadd.s32 %v2554, 88
    %v2566 = vadd.s32 %v2554, 96
    %v2567 = vadd.s32 %v2554, 104
    %v2568 = vadd.s32 %v2554, 112
    %v2569 = vadd.s32 %v2554, 120
    %v2570 = vadd.s32 %v2554, 128
    %v2571 = vadd.s32 %v2554, 136
    %v2572 = vadd.s32 %v2554, 144
    %v2573 = vadd.s32 %v2554, 152
    %v2574 = vadd.s32 %v2554, 160
    %v2575 = vadd.s32 %v2554, 168
    %v2576 = vadd.s32 %v2554, 176
    %v2577 = vadd.s32 %v2554, 184
    %v2578 = vadd.s32 %v2554, 192
    %v2579 = vadd.s32 %v2554, 200
    %v2580 = vadd.s32 %v2554, 208
    %v2581 = vadd.s32 %v2554, 216
    %v2582 = vadd.s32 %v2554, 224
    %v2583 = vadd.s32 %v2554, 232
    %v2584 = vadd.s32 %v2554, 240
    %v2585 = vadd.s32 %v2554, 248
    %s2586 = smul.u32 0, 256
    %v2587 = vstv %s2586
    %v2588 = vadd.s32 %v2554, %v2587
    %v2589 = vadd.s32 %v2555, %v2587
    %v2590 = vadd.s32 %v2556, %v2587
    %v2591 = vadd.s32 %v2557, %v2587
    %v2592 = vadd.s32 %v2558, %v2587
    %v2593 = vadd.s32 %v2559, %v2587
    %v2594 = vadd.s32 %v2560, %v2587
    %v2595 = vadd.s32 %v2561, %v2587
    %v2596 = vadd.s32 %v2562, %v2587
    %v2597 = vadd.s32 %v2563, %v2587
    %v2598 = vadd.s32 %v2564, %v2587
    %v2599 = vadd.s32 %v2565, %v2587
    %v2600 = vadd.s32 %v2566, %v2587
    %v2601 = vadd.s32 %v2567, %v2587
    %v2602 = vadd.s32 %v2568, %v2587
    %v2603 = vadd.s32 %v2569, %v2587
    %v2604 = vadd.s32 %v2570, %v2587
    %v2605 = vadd.s32 %v2571, %v2587
    %v2606 = vadd.s32 %v2572, %v2587
    %v2607 = vadd.s32 %v2573, %v2587
    %v2608 = vadd.s32 %v2574, %v2587
    %v2609 = vadd.s32 %v2575, %v2587
    %v2610 = vadd.s32 %v2576, %v2587
    %v2611 = vadd.s32 %v2577, %v2587
    %v2612 = vadd.s32 %v2578, %v2587
    %v2613 = vadd.s32 %v2579, %v2587
    %v2614 = vadd.s32 %v2580, %v2587
    %v2615 = vadd.s32 %v2581, %v2587
    %v2616 = vadd.s32 %v2582, %v2587
    %v2617 = vadd.s32 %v2583, %v2587
    %v2618 = vadd.s32 %v2584, %v2587
    %v2619 = vadd.s32 %v2585, %v2587
    %vm2620 = vcmp.lt.s32.totalorder %v2588, 200
    %vm2621 = vcmp.lt.s32.totalorder %v2589, 200
    %vm2622 = vcmp.lt.s32.totalorder %v2590, 200
    %vm2623 = vcmp.lt.s32.totalorder %v2591, 200
    %vm2624 = vcmp.lt.s32.totalorder %v2592, 200
    %vm2625 = vcmp.lt.s32.totalorder %v2593, 200
    %vm2626 = vcmp.lt.s32.totalorder %v2594, 200
    %vm2627 = vcmp.lt.s32.totalorder %v2595, 200
    %vm2628 = vcmp.lt.s32.totalorder %v2596, 200
    %vm2629 = vcmp.lt.s32.totalorder %v2597, 200
    %vm2630 = vcmp.lt.s32.totalorder %v2598, 200
    %vm2631 = vcmp.lt.s32.totalorder %v2599, 200
    %vm2632 = vcmp.lt.s32.totalorder %v2600, 200
    %vm2633 = vcmp.lt.s32.totalorder %v2601, 200
    %vm2634 = vcmp.lt.s32.totalorder %v2602, 200
    %vm2635 = vcmp.lt.s32.totalorder %v2603, 200
    %vm2636 = vcmp.lt.s32.totalorder %v2604, 200
    %vm2637 = vcmp.lt.s32.totalorder %v2605, 200
    %vm2638 = vcmp.lt.s32.totalorder %v2606, 200
    %vm2639 = vcmp.lt.s32.totalorder %v2607, 200
    %vm2640 = vcmp.lt.s32.totalorder %v2608, 200
    %vm2641 = vcmp.lt.s32.totalorder %v2609, 200
    %vm2642 = vcmp.lt.s32.totalorder %v2610, 200
    %vm2643 = vcmp.lt.s32.totalorder %v2611, 200
    %vm2644 = vcmp.lt.s32.totalorder %v2612, 200
    %vm2645 = vcmp.lt.s32.totalorder %v2613, 200
    %vm2646 = vcmp.lt.s32.totalorder %v2614, 200
    %vm2647 = vcmp.lt.s32.totalorder %v2615, 200
    %vm2648 = vcmp.lt.s32.totalorder %v2616, 200
    %vm2649 = vcmp.lt.s32.totalorder %v2617, 200
    %vm2650 = vcmp.lt.s32.totalorder %v2618, 200
    %vm2651 = vcmp.lt.s32.totalorder %v2619, 200
    %v2652 = vsel %vm2620, 1, 0
    %v2653 = vsel %vm2621, 1, 0
    %v2654 = vsel %vm2622, 1, 0
    %v2655 = vsel %vm2623, 1, 0
    %v2656 = vsel %vm2624, 1, 0
    %v2657 = vsel %vm2625, 1, 0
    %v2658 = vsel %vm2626, 1, 0
    %v2659 = vsel %vm2627, 1, 0
    %v2660 = vsel %vm2628, 1, 0
    %v2661 = vsel %vm2629, 1, 0
    %v2662 = vsel %vm2630, 1, 0
    %v2663 = vsel %vm2631, 1, 0
    %v2664 = vsel %vm2632, 1, 0
    %v2665 = vsel %vm2633, 1, 0
    %v2666 = vsel %vm2634, 1, 0
    %v2667 = vsel %vm2635, 1, 0
    %v2668 = vsel %vm2636, 1, 0
    %v2669 = vsel %vm2637, 1, 0
    %v2670 = vsel %vm2638, 1, 0
    %v2671 = vsel %vm2639, 1, 0
    %v2672 = vsel %vm2640, 1, 0
    %v2673 = vsel %vm2641, 1, 0
    %v2674 = vsel %vm2642, 1, 0
    %v2675 = vsel %vm2643, 1, 0
    %v2676 = vsel %vm2644, 1, 0
    %v2677 = vsel %vm2645, 1, 0
    %v2678 = vsel %vm2646, 1, 0
    %v2679 = vsel %vm2647, 1, 0
    %v2680 = vsel %vm2648, 1, 0
    %v2681 = vsel %vm2649, 1, 0
    %v2682 = vsel %vm2650, 1, 0
    %v2683 = vsel %vm2651, 1, 0
    %vm2684 = vcmp.eq.s32.totalorder %v2652, 1
    %vm2685 = vcmp.eq.s32.totalorder %v2653, 1
    %vm2686 = vcmp.eq.s32.totalorder %v2654, 1
    %vm2687 = vcmp.eq.s32.totalorder %v2655, 1
    %vm2688 = vcmp.eq.s32.totalorder %v2656, 1
    %vm2689 = vcmp.eq.s32.totalorder %v2657, 1
    %vm2690 = vcmp.eq.s32.totalorder %v2658, 1
    %vm2691 = vcmp.eq.s32.totalorder %v2659, 1
    %vm2692 = vcmp.eq.s32.totalorder %v2660, 1
    %vm2693 = vcmp.eq.s32.totalorder %v2661, 1
    %vm2694 = vcmp.eq.s32.totalorder %v2662, 1
    %vm2695 = vcmp.eq.s32.totalorder %v2663, 1
    %vm2696 = vcmp.eq.s32.totalorder %v2664, 1
    %vm2697 = vcmp.eq.s32.totalorder %v2665, 1
    %vm2698 = vcmp.eq.s32.totalorder %v2666, 1
    %vm2699 = vcmp.eq.s32.totalorder %v2667, 1
    %vm2700 = vcmp.eq.s32.totalorder %v2668, 1
    %vm2701 = vcmp.eq.s32.totalorder %v2669, 1
    %vm2702 = vcmp.eq.s32.totalorder %v2670, 1
    %vm2703 = vcmp.eq.s32.totalorder %v2671, 1
    %vm2704 = vcmp.eq.s32.totalorder %v2672, 1
    %vm2705 = vcmp.eq.s32.totalorder %v2673, 1
    %vm2706 = vcmp.eq.s32.totalorder %v2674, 1
    %vm2707 = vcmp.eq.s32.totalorder %v2675, 1
    %vm2708 = vcmp.eq.s32.totalorder %v2676, 1
    %vm2709 = vcmp.eq.s32.totalorder %v2677, 1
    %vm2710 = vcmp.eq.s32.totalorder %v2678, 1
    %vm2711 = vcmp.eq.s32.totalorder %v2679, 1
    %vm2712 = vcmp.eq.s32.totalorder %v2680, 1
    %vm2713 = vcmp.eq.s32.totalorder %v2681, 1
    %vm2714 = vcmp.eq.s32.totalorder %v2682, 1
    %vm2715 = vcmp.eq.s32.totalorder %v2683, 1
    %v2716 = vsel %vm2684, %v2521, 0.0
    %v2717 = vsel %vm2685, %v2522, 0.0
    %v2718 = vsel %vm2686, %v2523, 0.0
    %v2719 = vsel %vm2687, %v2524, 0.0
    %v2720 = vsel %vm2688, %v2525, 0.0
    %v2721 = vsel %vm2689, %v2526, 0.0
    %v2722 = vsel %vm2690, %v2527, 0.0
    %v2723 = vsel %vm2691, %v2528, 0.0
    %v2724 = vsel %vm2692, %v2529, 0.0
    %v2725 = vsel %vm2693, %v2530, 0.0
    %v2726 = vsel %vm2694, %v2531, 0.0
    %v2727 = vsel %vm2695, %v2532, 0.0
    %v2728 = vsel %vm2696, %v2533, 0.0
    %v2729 = vsel %vm2697, %v2534, 0.0
    %v2730 = vsel %vm2698, %v2535, 0.0
    %v2731 = vsel %vm2699, %v2536, 0.0
    %v2732 = vsel %vm2700, %v2537, 0.0
    %v2733 = vsel %vm2701, %v2538, 0.0
    %v2734 = vsel %vm2702, %v2539, 0.0
    %v2735 = vsel %vm2703, %v2540, 0.0
    %v2736 = vsel %vm2704, %v2541, 0.0
    %v2737 = vsel %vm2705, %v2542, 0.0
    %v2738 = vsel %vm2706, %v2543, 0.0
    %v2739 = vsel %vm2707, %v2544, 0.0
    %v2740 = vsel %vm2708, %v2545, 0.0
    %v2741 = vsel %vm2709, %v2546, 0.0
    %v2742 = vsel %vm2710, %v2547, 0.0
    %v2743 = vsel %vm2711, %v2548, 0.0
    %v2744 = vsel %vm2712, %v2549, 0.0
    %v2745 = vsel %vm2713, %v2550, 0.0
    %v2746 = vsel %vm2714, %v2551, 0.0
    %v2747 = vsel %vm2715, %v2552, 0.0
    %v2748 = vadd.f32 %v2716, %v2717
    %v2749 = vadd.f32 %v2748, %v2718
    %v2750 = vadd.f32 %v2749, %v2719
    %v2751 = vadd.f32 %v2750, %v2720
    %v2752 = vadd.f32 %v2751, %v2721
    %v2753 = vadd.f32 %v2752, %v2722
    %v2754 = vadd.f32 %v2753, %v2723
    %v2755 = vadd.f32 %v2754, %v2724
    %v2756 = vadd.f32 %v2755, %v2725
    %v2757 = vadd.f32 %v2756, %v2726
    %v2758 = vadd.f32 %v2757, %v2727
    %v2759 = vadd.f32 %v2758, %v2728
    %v2760 = vadd.f32 %v2759, %v2729
    %v2761 = vadd.f32 %v2760, %v2730
    %v2762 = vadd.f32 %v2761, %v2731
    %v2763 = vadd.f32 %v2762, %v2732
    %v2764 = vadd.f32 %v2763, %v2733
    %v2765 = vadd.f32 %v2764, %v2734
    %v2766 = vadd.f32 %v2765, %v2735
    %v2767 = vadd.f32 %v2766, %v2736
    %v2768 = vadd.f32 %v2767, %v2737
    %v2769 = vadd.f32 %v2768, %v2738
    %v2770 = vadd.f32 %v2769, %v2739
    %v2771 = vadd.f32 %v2770, %v2740
    %v2772 = vadd.f32 %v2771, %v2741
    %v2773 = vadd.f32 %v2772, %v2742
    %v2774 = vadd.f32 %v2773, %v2743
    %v2775 = vadd.f32 %v2774, %v2744
    %v2776 = vadd.f32 %v2775, %v2745
    %v2777 = vadd.f32 %v2776, %v2746
    %v2778 = vadd.f32 %v2777, %v2747
    %2779 = vadd.xlane.f32.xlu0 %v2778
    %v2780 = vpop.xlane.xlu0 %2779
    %v2781 = vrot.slane %v2780, 4
    %v2782 = vadd.f32 %v2780, %v2781
    %v2783 = vrot.slane %v2782, 2
    %v2784 = vadd.f32 %v2782, %v2783
    %v2785 = vrot.slane %v2784, 1
    %v2786 = vadd.f32 %v2784, %v2785
    %s2787 = vtos %v2786
    %v2788 = vstv %s2787
    %v2789 = vadd.f32 %v2788, 0.0
    %vm2790 = vcmask 0
    %2791 = vst.msk [vmem:[#allocation9] sm:$0x1] %vm2790, %v2789
    // Predicated region
    $region26: #{tpu_custom_call.1} parent=1 // pred_check
      _
    $region27: #{tpu_custom_call.1} parent=1 // pred_check_branch
      %2793 = sbr.rel (0) target = $region29
    $region28: #{tpu_custom_call.1} parent=1 // pred_region
      %s2795 = ssub.s32 32, 32
      %2796 = vsyncadd [#allocation4], %s2795
      %s2798 = sshll.u32 [#allocation8], 4
      %s2799 = int_to_ptr.vmem [resolvable:$true] %s2798
      %2801 = dma.vmem_to_hbm [thread:$0]  %s2799, 32, %s3, [#allocation4]
    $region29: #{tpu_custom_call.1} parent=1 // pred_fallthru
      _
    // Predicated region
    $region30: #{tpu_custom_call.1} parent=1 // pred_check
      _
    $region31: #{tpu_custom_call.1} parent=1 // pred_check_branch
      %2803 = sbr.rel (0) target = $region33
    $region32: #{tpu_custom_call.1} parent=1 // pred_region
      %s2805 = ssub.s32 16, 16
      %2806 = vsyncadd [#allocation10], %s2805
      %s2808 = sshll.u32 [#allocation9], 4
      %s2809 = int_to_ptr.vmem [resolvable:$true] %s2808
      %2811 = dma.vmem_to_hbm [thread:$0]  %s2809, 16, %s4, [#allocation10]
    $region33: #{tpu_custom_call.1} parent=1 // pred_fallthru
      _
    // Predicated region
    $region34: #{tpu_custom_call.1} parent=1 // pred_check
      _
    $region35: #{tpu_custom_call.1} parent=1 // pred_check_branch
      %2813 = sbr.rel (0) target = $region37
    $region36: #{tpu_custom_call.1} parent=1 // pred_region
      %2814 = dma.done [#allocation4], 32
    $region37: #{tpu_custom_call.1} parent=1 // pred_fallthru
      _
    // Predicated region
    $region38: #{tpu_custom_call.1} parent=1 // pred_check
      _
    $region39: #{tpu_custom_call.1} parent=1 // pred_check_branch
      %2816 = sbr.rel (0) target = $region41
    $region40: #{tpu_custom_call.1} parent=1 // pred_region
      %2817 = dma.done [#allocation10], 16
    $region41: #{tpu_custom_call.1} parent=1 // pred_fallthru
      _
    %2818 = vsyncpa [#allocation3], 1
    %2819 = vsyncpa [#allocation6], 1
    %2820 = vsyncpa [#allocation4], 1
    %2821 = vsyncpa [#allocation10], 1

</llo_original>
